<compile_context>
chip_gen: v5e
topology: v5e:2x2
jax: 0.10.0
libtpu: 0.0.40
codegen_flags: <defaults>
</compile_context>

<pallas_src>
import functools

import jax
import jax.numpy as jnp
from jax.experimental import pallas as pl
from jax.experimental.pallas import tpu as pltpu


def _expand_kernel(x_ref, o_ref, *, gain, c_out):
    """x_ref: (C, TH, W)  ->  o_ref: (c_out, TH*gain, W*gain)."""
    s = gain
    _, th, w = x_ref.shape
    x = x_ref[...]                                   # single whole-tile load

    for s1 in range(s):                              # static unroll (s is tiny)
        # Lane interleave of the s chunks that feed output rows i*s + s1:
        #   r[c', i, j*s + s2] = x[(s1*s + s2)*c_out + c', i, j]
        cols = [x[(s1 * s + s2) * c_out:(s1 * s + s2 + 1) * c_out][..., None]
                for s2 in range(s)]
        r = jnp.concatenate(cols, axis=-1).reshape(c_out, th, w * s)
        # Sublane-strided, full-lane-width store of the lane-dense row slab:
        #   out[c', i*s + s1, :] = r[c', i, :]
        o_ref[:, pl.ds(s1, th, stride=s), :] = r


def expand(x, gain=2):
    b, c, h, w = x.shape
    s = gain
    assert c % (s * s) == 0, (c, s)
    c_out = c // (s * s)

    itemsize = jnp.dtype(x.dtype).itemsize
    # Packed sublane multiple: 8 for f32, 16 for bf16/f16, 32 for int8/fp8.
    sub = max(8, 32 // itemsize)

    # Per-block bytes: input block (c, th, w) and output block (c_out, th*s, w*s)
    # hold the same number of elements.
    def block_bytes(th):
        return c * th * w * itemsize

    # Real VMEM footprint: double-buffered input + double-buffered output
    # (BlockSpec pipelining) + shuffle temporaries (~= 2 more blocks).
    def footprint(th):
        return 6 * block_bytes(th)

    # Keep the working set comfortably under v7x's 32 MiB scoped / 64 MiB
    # physical VMEM (v5e/v6e have more headroom).
    target = 24 * 1024 * 1024

    if h <= sub:
        th = h                                     # full-dim block is always legal
    else:
        max_th_budget = max(sub, (target // (6 * c * w * itemsize)) // sub * sub)
        divisors = [d for d in range(sub, h + 1, sub)
                    if h % d == 0 and d <= max_th_budget]
        if divisors:
            th = max(divisors)
        else:
            # No fitting divisor: take the largest budget-fitting multiple of
            # `sub`; the ragged tail becomes a padded partial block via cdiv.
            th = min(max_th_budget, max(sub, (h // sub) * sub))

    # v7x has 2 TensorCores: make sure there are >= 2 parallel grid steps even
    # when the tensor would fit in a single block.
    if b == 1 and -(-h // th) < 2 and h >= 2 * sub:
        half = (h // 2 // sub) * sub
        if half >= sub:
            th = half

    n_h = pl.cdiv(h, th)
    grid = (b, n_h)

    vmem_limit = int(min(48 << 20, max(footprint(th) * 5 // 4 + (1 << 20), 16 << 20)))

    kernel = functools.partial(_expand_kernel, gain=s, c_out=c_out)

    return pl.pallas_call(
        kernel,
        out_shape=jax.ShapeDtypeStruct((b, c_out, h * s, w * s), x.dtype),
        grid=grid,
        in_specs=[pl.BlockSpec((None, c, th, w),
                               lambda bi, hi: (bi, 0, hi, 0))],
        out_specs=pl.BlockSpec((None, c_out, th * s, w * s),
                               lambda bi, hi: (bi, 0, hi, 0)),
        compiler_params=pltpu.CompilerParams(
            dimension_semantics=("parallel", "parallel"),
            vmem_limit_bytes=vmem_limit),
        cost_estimate=pl.CostEstimate(
            flops=0, transcendentals=0,
            bytes_accessed=2 * x.size * itemsize),
    )(x)


# ----------------------------------------------------------------------------
# Pure-JAX reference (mirrors the PyTorch module exactly)
# ----------------------------------------------------------------------------
def expand_reference(x, gain=2):
    b, c, h, w = x.shape
    s = gain
    y = x.reshape(b, s, s, c // (s * s), h, w)
    y = jnp.transpose(y, (0, 3, 4, 1, 5, 2))
    return y.reshape(b, c // (s * s), h * s, w * s)


if __name__ == "__main__":
    key = jax.random.PRNGKey(0)
    k1, k2 = jax.random.split(key)

    # NCHW, matching the PyTorch module: [2, 4, 16, 16], gain=2 -> [2, 1, 32, 32]
    x = jax.random.normal(k1, (2, 4, 16, 16), dtype=jnp.float32)
    out = jax.block_until_ready(expand(x, gain=2))
    ref = expand_reference(x, gain=2)
    assert out.shape == (2, 1, 32, 32), out.shape
    assert bool(jnp.array_equal(out, ref)), float(jnp.max(jnp.abs(out - ref)))

    # second shape exercising c_out > 1 and the forced >=2 H-tile path
    # (b == 1): [1, 8, 16, 16] -> [1, 2, 32, 32]
    x2 = jax.random.normal(k2, (1, 8, 16, 16), dtype=jnp.float32)
    out2 = jax.block_until_ready(expand(x2, gain=2))
    ref2 = expand_reference(x2, gain=2)
    assert out2.shape == (1, 2, 32, 32), out2.shape
    assert bool(jnp.array_equal(out2, ref2)), float(jnp.max(jnp.abs(out2 - ref2)))

    print("KERNEL_OK")
</pallas_src>

<mosaic_0001>
module attributes {stable_mosaic.version = 11 : i64} {
  func.func @_expand_kernel(%arg0: i32, %arg1: i32, %arg2: memref<1x4x16x16xf32, #tpu.memory_space<vmem>>, %arg3: memref<1x1x32x32xf32, #tpu.memory_space<vmem>>) attributes {dimension_semantics = [#tpu.dimension_semantics<parallel>, #tpu.dimension_semantics<parallel>], iteration_bounds = array<i64: 2, 1>, scalar_prefetch = 0 : i64, scratch_operands = 0 : i64, tpu.core_type = #tpu.core_type<tc>, window_params = [{transform_indices = @transform_0, window_bounds = array<i64: 1, 4, 16, 16>}, {transform_indices = @transform_1, window_bounds = array<i64: 1, 1, 32, 32>}]} {
    %c0 = arith.constant 0 : index
    %c0_0 = arith.constant 0 : index
    %c0_1 = arith.constant 0 : index
    %c0_2 = arith.constant 0 : index
    %0 = vector.load %arg2[%c0, %c0_0, %c0_1, %c0_2] : memref<1x4x16x16xf32, #tpu.memory_space<vmem>>, vector<1x4x16x16xf32>
    %1 = vector.shape_cast %0 : vector<1x4x16x16xf32> to vector<4x16x16xf32>
    %2 = vector.extract_strided_slice %1 {offsets = [0, 0, 0], sizes = [1, 16, 16], strides = [1, 1, 1]} : vector<4x16x16xf32> to vector<1x16x16xf32>
    %3 = vector.shape_cast %2 : vector<1x16x16xf32> to vector<1x16x16x1xf32>
    %4 = vector.extract_strided_slice %1 {offsets = [1, 0, 0], sizes = [1, 16, 16], strides = [1, 1, 1]} : vector<4x16x16xf32> to vector<1x16x16xf32>
    %5 = vector.shape_cast %4 : vector<1x16x16xf32> to vector<1x16x16x1xf32>
    %6 = tpu.concatenate %3, %5 in 3 : vector<1x16x16x1xf32>, vector<1x16x16x1xf32> -> vector<1x16x16x2xf32>
    %7 = vector.shape_cast %6 : vector<1x16x16x2xf32> to vector<1x16x32xf32>
    %c0_3 = arith.constant 0 : index
    %c0_4 = arith.constant 0 : index
    %c0_5 = arith.constant 0 : index
    %c0_6 = arith.constant 0 : index
    %8 = tpu.strided_load %arg3[%c0_3, %c0_4, %c0_5, %c0_6] {strides = array<i32: 1, 1, 2, 1>} : memref<1x1x32x32xf32, #tpu.memory_space<vmem>>, vector<1x1x16x32xf32>
    %9 = vector.shape_cast %8 : vector<1x1x16x32xf32> to vector<1x16x32xf32>
    %10 = vector.shape_cast %7 : vector<1x16x32xf32> to vector<1x1x16x32xf32>
    tpu.strided_store %arg3[%c0_3, %c0_4, %c0_5, %c0_6], %10 {strides = array<i32: 1, 1, 2, 1>} : memref<1x1x32x32xf32, #tpu.memory_space<vmem>>, vector<1x1x16x32xf32>
    %11 = vector.extract_strided_slice %1 {offsets = [2, 0, 0], sizes = [1, 16, 16], strides = [1, 1, 1]} : vector<4x16x16xf32> to vector<1x16x16xf32>
    %12 = vector.shape_cast %11 : vector<1x16x16xf32> to vector<1x16x16x1xf32>
    %13 = vector.extract_strided_slice %1 {offsets = [3, 0, 0], sizes = [1, 16, 16], strides = [1, 1, 1]} : vector<4x16x16xf32> to vector<1x16x16xf32>
    %14 = vector.shape_cast %13 : vector<1x16x16xf32> to vector<1x16x16x1xf32>
    %15 = tpu.concatenate %12, %14 in 3 : vector<1x16x16x1xf32>, vector<1x16x16x1xf32> -> vector<1x16x16x2xf32>
    %16 = vector.shape_cast %15 : vector<1x16x16x2xf32> to vector<1x16x32xf32>
    %c0_7 = arith.constant 0 : index
    %c0_8 = arith.constant 0 : index
    %c1 = arith.constant 1 : index
    %c0_9 = arith.constant 0 : index
    %17 = tpu.strided_load %arg3[%c0_7, %c0_8, %c1, %c0_9] {strides = array<i32: 1, 1, 2, 1>} : memref<1x1x32x32xf32, #tpu.memory_space<vmem>>, vector<1x1x16x32xf32>
    %18 = vector.shape_cast %17 : vector<1x1x16x32xf32> to vector<1x16x32xf32>
    %19 = vector.shape_cast %16 : vector<1x16x32xf32> to vector<1x1x16x32xf32>
    tpu.strided_store %arg3[%c0_7, %c0_8, %c1, %c0_9], %19 {strides = array<i32: 1, 1, 2, 1>} : memref<1x1x32x32xf32, #tpu.memory_space<vmem>>, vector<1x1x16x32xf32>
    return
  }
  func.func @transform_0(%arg0: i32, %arg1: i32) -> (i32, i32, i32, i32) {
    %c0_i32 = arith.constant 0 : i32
    %c0_i32_0 = arith.constant 0 : i32
    %c0_i32_1 = arith.constant 0 : i32
    return %arg0, %c0_i32, %arg1, %c0_i32_0 : i32, i32, i32, i32
  }
  func.func @transform_1(%arg0: i32, %arg1: i32) -> (i32, i32, i32, i32) {
    %c0_i32 = arith.constant 0 : i32
    %c0_i32_0 = arith.constant 0 : i32
    %c0_i32_1 = arith.constant 0 : i32
    return %arg0, %c0_i32, %arg1, %c0_i32_0 : i32, i32, i32, i32
  }
}

</mosaic_0001>

<llo_original>
// kernel: tpu_custom_call.1
$region0: #{tpu_custom_call.1}
  #allocation0 [shape = 'u32[]', space=smem, size = 0x4, offset = 0x4, fixed_abs, tag = 'smem constant byte address 0x4 - core index']
  #allocation1 [shape = 'u32[72,128]{1,0:T(1,128)}', space=vmem, size = 0x9000, scoped, tag = 'internal scratch']
  %s0 = inlined_call_operand.hbm [shape: f32[2,4,16,16], index: 0, kind: input, shape index: {}]
  %s1 = inlined_call_operand.hbm [shape: f32[2,1,32,32], index: 1, kind: output, shape index: {}]
  %s2 = sld [smem:[#allocation0]]
  $region41: #{tpu_custom_call.1} parent=0
    _
  %s4 = ssub.s32 1, %s2
  %s5 = scalar_select 0, %s4, %s2
  $region1: #{tpu_custom_call.1} parent=0
    #allocation2 [shape = 'u8[65536]{0}', space=vmem, size = 0x10000, scoped, tag = 'input window, operand 0']
    #allocation3 [shape = 's32[2]{0}', space=sflag, size = 0x8, scoped, tag = 'scoped memory for tpu_custom_call.1']
    #allocation4 [shape = 's32[2]{0}', space=sflag, size = 0x8, scoped, tag = 'scoped memory for tpu_custom_call.1']
    #allocation5 [shape = 'u8[32768]{0}', space=vmem, size = 0x8000, scoped, tag = 'output window, operand 0']
    %6 = vsyncpa [#allocation3], 0
    %s7 = scalar_lea.sflag [#allocation3], 1
    %8 = vsyncpa %s7, 0
    %9 = vsyncpa [#allocation4], 0
    %s10 = scalar_lea.sflag [#allocation4], 1
    %11 = vsyncpa %s10, 0
    loop: start=0, step=1, limit=4
    $region2: #{tpu_custom_call.1} parent=1 // loop_pre_header
      _
    $region3: #{tpu_custom_call.1} parent=1 // loop_header
      %s13 = sphi 0, %s17
      %p14 = scmp.ge.s32.totalorder %s13, 4
      %s20 = sphi 0, %s32
      %s21 = sphi 0, %s28
      %s22 = sphi 0, %s20
      %s23 = sphi 0, %s21
      %s24 = sphi 0, %s22
      %s25 = sphi 0, %s23
      %s37 = sphi 0, %s39
      %s40 = sphi 0, %s37
      %s41 = sphi 0, %s40
      %s57 = sphi 0, %s41
      %s65 = sphi 0, %s67
      %s68 = sphi 0, %s65
      %s69 = sphi 0, %s68
      %s85 = sphi 0, %s69
    $region4: #{tpu_custom_call.1} parent=1 // loop_header_branch
      %16 = sbr.rel (%p14) target = $region8
    $region5: #{tpu_custom_call.1} parent=1 // loop_body
      %s18 = ssub.s32 %s13, 1
      %s19 = ssub.s32 %s13, 2
      %s26 = sadd.s32 1, %s21
      %p27 = scmp.ge.s32.totalorder %s26, 1
      %s28 = scalar_select %p27, 0, %s26
      %s29 = sadd.s32 1, %s20
      %s30 = scalar_select %p27, %s29, %s20
      %p31 = scmp.ge.s32.totalorder %s30, 2
      %s32 = scalar_select %p31, 0, %s30
      %s33 = ssub.s32 %s20, %s32
      %s34 = ssub.s32 %s21, %s28
      %s35 = sor.u32 %s33, %s34
      %p36 = scmp.eq.s32.totalorder %s35, 0
      %s38 = sadd.s32 %s37, 1
      %s39 = scalar_select %p36, %s37, %s38
      %p42 = pneg %p36
      %p43 = scmp.eq.s32.totalorder %s13, 1
      %p44 = por %p42, %p43
      %p45 = scmp.ne.s32.totalorder %s37, %s40
      %p46 = scmp.eq.s32.totalorder %s13, 0
      %p47 = por %p45, %p46
      %p48 = scmp.ne.s32.totalorder %s37, %s40
      %p49 = scmp.eq.s32.totalorder %s18, 1
      %p50 = por %p48, %p49
      %p51 = scmp.ne.s32.totalorder %s40, %s41
      %p52 = scmp.eq.s32.totalorder %s18, 0
      %p53 = por %p51, %p52
      %p54 = scmp.ne.s32.totalorder %s40, %s41
      %p55 = scmp.eq.s32.totalorder %s19, 1
      %p56 = por %p54, %p55
      %p58 = scmp.ne.s32.totalorder %s41, %s57
      %p59 = scmp.eq.s32.totalorder %s19, 0
      %p60 = por %p58, %p59
      %s61 = ssub.s32 %s20, %s32
      %s62 = ssub.s32 %s21, %s28
      %s63 = sor.u32 %s61, %s62
      %p64 = scmp.eq.s32.totalorder %s63, 0
      %s66 = sadd.s32 %s65, 1
      %s67 = scalar_select %p64, %s65, %s66
      %p70 = pneg %p64
      %p71 = scmp.eq.s32.totalorder %s13, 1
      %p72 = por %p70, %p71
      %p73 = scmp.ne.s32.totalorder %s65, %s68
      %p74 = scmp.eq.s32.totalorder %s13, 0
      %p75 = por %p73, %p74
      %p76 = scmp.ne.s32.totalorder %s65, %s68
      %p77 = scmp.eq.s32.totalorder %s18, 1
      %p78 = por %p76, %p77
      %p79 = scmp.ne.s32.totalorder %s68, %s69
      %p80 = scmp.eq.s32.totalorder %s18, 0
      %p81 = por %p79, %p80
      %p82 = scmp.ne.s32.totalorder %s68, %s69
      %p83 = scmp.eq.s32.totalorder %s19, 1
      %p84 = por %p82, %p83
      %p86 = scmp.ne.s32.totalorder %s69, %s85
      %p87 = scmp.eq.s32.totalorder %s19, 0
      %p88 = por %p86, %p87
      %p89 = scmp.le.s32.totalorder 1, %s13
      %p90 = scmp.lt.s32.totalorder %s13, 3
      %p91 = pnand %p89, %p90
      %p92 = pneg %p91
      // Predicated region
      $region9: #{tpu_custom_call.1} parent=5 // pred_check
        _
      $region10: #{tpu_custom_call.1} parent=5 // pred_check_branch
        %94 = sbr.rel (%p91) target = $region12
      $region11: #{tpu_custom_call.1} parent=5 // pred_region
        %s95 = ssub.s32 %s13, 1
      $region12: #{tpu_custom_call.1} parent=5 // pred_fallthru
        _
      %p96 = scmp.lt.s32.totalorder %s13, 2
      // Predicated region
      $region13: #{tpu_custom_call.1} parent=5 // pred_check
        %p97 = pneg %p96
      $region14: #{tpu_custom_call.1} parent=5 // pred_check_branch
        %99 = sbr.rel (%p97) target = $region16
      $region15: #{tpu_custom_call.1} parent=5 // pred_region
        // Predicated region
        $region17: #{tpu_custom_call.1} parent=15 // pred_check
          %p100 = pneg %p47
        $region18: #{tpu_custom_call.1} parent=15 // pred_check_branch
          %102 = sbr.rel (%p100) target = $region20
        $region19: #{tpu_custom_call.1} parent=15 // pred_region
          %s103 = sand.u32 %s37, 1
          %s104 = scalar_lea.sflag [#allocation3], %s103
          %s105 = sand.u32 %s37, 1
          %s106 = smul.addr %s105, 64
          %s107 = scalar_lea.vmem [#allocation2], %s106
          %s108 = smul.u32 2, %s21
          %110 = vsyncadd %s104, 0
          %s111 = smul.addr %s20, 8
          %s112 = sadd.s32 %s108, %s111
          %s113 = smul.addr %s112, 8
          %s114 = scalar_lea.hbm %s0, %s113
          %s115 = sshll.u32 %s114, 4
          %s116 = int_to_ptr.hbm [resolvable:$true] %s115
          %s117 = sshll.u32 %s107, 4
          %s118 = int_to_ptr.vmem [resolvable:$true] %s117
          %123 = dma.hbm_to_vmem [thread:$0]  %s116, 1024, %s118, %s104, 128, 128, 8
        $region20: #{tpu_custom_call.1} parent=15 // pred_fallthru
          _
      $region16: #{tpu_custom_call.1} parent=5 // pred_fallthru
        _
      %p124 = scmp.le.s32.totalorder 1, %s13
      %p125 = scmp.lt.s32.totalorder %s13, 3
      %p126 = pnand %p124, %p125
      %p127 = pneg %p126
      // Predicated region
      $region21: #{tpu_custom_call.1} parent=5 // pred_check
        _
      $region22: #{tpu_custom_call.1} parent=5 // pred_check_branch
        %129 = sbr.rel (%p126) target = $region24
      $region23: #{tpu_custom_call.1} parent=5 // pred_region
        %s130 = ssub.s32 %s13, 1
        %s131 = sand.u32 %s40, 1
        %s132 = scalar_lea.sflag [#allocation3], %s131
        %s133 = sand.u32 %s40, 1
        %s134 = smul.addr %s133, 64
        %s135 = scalar_lea.vmem [#allocation2], %s134
        // Predicated region
        $region25: #{tpu_custom_call.1} parent=23 // pred_check
          %p136 = pneg %p53
        $region26: #{tpu_custom_call.1} parent=23 // pred_check_branch
          %138 = sbr.rel (%p136) target = $region28
        $region27: #{tpu_custom_call.1} parent=23 // pred_region
          %140 = dma.done %s132, 1024
        $region28: #{tpu_custom_call.1} parent=23 // pred_fallthru
          _
        %s141 = sand.u32 %s40, 1
        %s142 = scalar_lea.sflag [#allocation3], %s141
        %s143 = sand.u32 %s40, 1
        %s144 = smul.addr %s143, 64
        %s145 = scalar_lea.vmem [#allocation2], %s144
        %p146 = pneg %p53
        %p147 = pneg %p50
        %p148 = pneg %p81
        %p149 = pneg %p78
        %s150 = sand.u32 %s68, 1
        %s151 = scalar_lea.sflag [#allocation4], %s150
        %s152 = sand.u32 %s68, 1
        %s153 = smul.addr %s152, 32
        %s154 = scalar_lea.vmem [#allocation5], %s153
        %s155 = smul.u32 2, %s23
        %s156 = smul.u32 4, %s23
        %v157 = vld [vmem:[%s135] sm:$0xff]
        %v158 = vld [vmem:[%s135 + $0x8] sm:$0xff]
        %v159 = vld [vmem:[%s135 + $0x10] sm:$0xff]
        %v160 = vld [vmem:[%s135 + $0x18] sm:$0xff]
        %v161 = vld [vmem:[%s135 + $0x20] sm:$0xff]
        %v162 = vld [vmem:[%s135 + $0x28] sm:$0xff]
        %v163 = vld [vmem:[%s135 + $0x30] sm:$0xff]
        %v164 = vld [vmem:[%s135 + $0x38] sm:$0xff]
        %v165 = vperm.slane %v157, 0
        %v166 = vlaneseq
        %v167 = vshrl.u32 %v166, 7
        %169 = vset.pattern.permute.xlu0 %v167
        %170 = vperm.xlu0 %169, %v165
        %v171 = vpop.permute.xlu0 %170
        %v172 = vlaneseq
        %v173 = vshrl.u32 %v172, 7
        %v174 = vadd.s32 %v173, 8
        %175 = vset.pattern.permute.xlu0 %v174
        %176 = vperm.xlu0 %175, %v165
        %v177 = vpop.permute.xlu0 %176
        %v178 = vperm.slane %v157, 1
        %v179 = vlaneseq
        %v180 = vshrl.u32 %v179, 7
        %182 = vset.pattern.permute.xlu0 %v180
        %183 = vperm.xlu0 %182, %v178
        %v184 = vpop.permute.xlu0 %183
        %v185 = vlaneseq
        %v186 = vshrl.u32 %v185, 7
        %v187 = vadd.s32 %v186, 8
        %188 = vset.pattern.permute.xlu0 %v187
        %189 = vperm.xlu0 %188, %v178
        %v190 = vpop.permute.xlu0 %189
        %v191 = vperm.slane %v157, 2
        %v192 = vlaneseq
        %v193 = vshrl.u32 %v192, 7
        %195 = vset.pattern.permute.xlu0 %v193
        %196 = vperm.xlu0 %195, %v191
        %v197 = vpop.permute.xlu0 %196
        %v198 = vlaneseq
        %v199 = vshrl.u32 %v198, 7
        %v200 = vadd.s32 %v199, 8
        %201 = vset.pattern.permute.xlu0 %v200
        %202 = vperm.xlu0 %201, %v191
        %v203 = vpop.permute.xlu0 %202
        %v204 = vperm.slane %v157, 3
        %v205 = vlaneseq
        %v206 = vshrl.u32 %v205, 7
        %208 = vset.pattern.permute.xlu0 %v206
        %209 = vperm.xlu0 %208, %v204
        %v210 = vpop.permute.xlu0 %209
        %v211 = vlaneseq
        %v212 = vshrl.u32 %v211, 7
        %v213 = vadd.s32 %v212, 8
        %214 = vset.pattern.permute.xlu0 %v213
        %215 = vperm.xlu0 %214, %v204
        %v216 = vpop.permute.xlu0 %215
        %v217 = vperm.slane %v157, 4
        %v218 = vlaneseq
        %v219 = vshrl.u32 %v218, 7
        %221 = vset.pattern.permute.xlu0 %v219
        %222 = vperm.xlu0 %221, %v217
        %v223 = vpop.permute.xlu0 %222
        %v224 = vlaneseq
        %v225 = vshrl.u32 %v224, 7
        %v226 = vadd.s32 %v225, 8
        %227 = vset.pattern.permute.xlu0 %v226
        %228 = vperm.xlu0 %227, %v217
        %v229 = vpop.permute.xlu0 %228
        %v230 = vperm.slane %v157, 5
        %v231 = vlaneseq
        %v232 = vshrl.u32 %v231, 7
        %234 = vset.pattern.permute.xlu0 %v232
        %235 = vperm.xlu0 %234, %v230
        %v236 = vpop.permute.xlu0 %235
        %v237 = vlaneseq
        %v238 = vshrl.u32 %v237, 7
        %v239 = vadd.s32 %v238, 8
        %240 = vset.pattern.permute.xlu0 %v239
        %241 = vperm.xlu0 %240, %v230
        %v242 = vpop.permute.xlu0 %241
        %v243 = vperm.slane %v157, 6
        %v244 = vlaneseq
        %v245 = vshrl.u32 %v244, 7
        %247 = vset.pattern.permute.xlu0 %v245
        %248 = vperm.xlu0 %247, %v243
        %v249 = vpop.permute.xlu0 %248
        %v250 = vlaneseq
        %v251 = vshrl.u32 %v250, 7
        %v252 = vadd.s32 %v251, 8
        %253 = vset.pattern.permute.xlu0 %v252
        %254 = vperm.xlu0 %253, %v243
        %v255 = vpop.permute.xlu0 %254
        %v256 = vperm.slane %v157, 7
        %v257 = vlaneseq
        %v258 = vshrl.u32 %v257, 7
        %260 = vset.pattern.permute.xlu0 %v258
        %261 = vperm.xlu0 %260, %v256
        %v262 = vpop.permute.xlu0 %261
        %v263 = vlaneseq
        %v264 = vshrl.u32 %v263, 7
        %v265 = vadd.s32 %v264, 8
        %266 = vset.pattern.permute.xlu0 %v265
        %267 = vperm.xlu0 %266, %v256
        %v268 = vpop.permute.xlu0 %267
        %v269 = vperm.slane %v158, 0
        %v270 = vlaneseq
        %v271 = vshrl.u32 %v270, 7
        %273 = vset.pattern.permute.xlu0 %v271
        %274 = vperm.xlu0 %273, %v269
        %v275 = vpop.permute.xlu0 %274
        %v276 = vlaneseq
        %v277 = vshrl.u32 %v276, 7
        %v278 = vadd.s32 %v277, 8
        %279 = vset.pattern.permute.xlu0 %v278
        %280 = vperm.xlu0 %279, %v269
        %v281 = vpop.permute.xlu0 %280
        %v282 = vperm.slane %v158, 1
        %v283 = vlaneseq
        %v284 = vshrl.u32 %v283, 7
        %286 = vset.pattern.permute.xlu0 %v284
        %287 = vperm.xlu0 %286, %v282
        %v288 = vpop.permute.xlu0 %287
        %v289 = vlaneseq
        %v290 = vshrl.u32 %v289, 7
        %v291 = vadd.s32 %v290, 8
        %292 = vset.pattern.permute.xlu0 %v291
        %293 = vperm.xlu0 %292, %v282
        %v294 = vpop.permute.xlu0 %293
        %v295 = vperm.slane %v158, 2
        %v296 = vlaneseq
        %v297 = vshrl.u32 %v296, 7
        %299 = vset.pattern.permute.xlu0 %v297
        %300 = vperm.xlu0 %299, %v295
        %v301 = vpop.permute.xlu0 %300
        %v302 = vlaneseq
        %v303 = vshrl.u32 %v302, 7
        %v304 = vadd.s32 %v303, 8
        %305 = vset.pattern.permute.xlu0 %v304
        %306 = vperm.xlu0 %305, %v295
        %v307 = vpop.permute.xlu0 %306
        %v308 = vperm.slane %v158, 3
        %v309 = vlaneseq
        %v310 = vshrl.u32 %v309, 7
        %312 = vset.pattern.permute.xlu0 %v310
        %313 = vperm.xlu0 %312, %v308
        %v314 = vpop.permute.xlu0 %313
        %v315 = vlaneseq
        %v316 = vshrl.u32 %v315, 7
        %v317 = vadd.s32 %v316, 8
        %318 = vset.pattern.permute.xlu0 %v317
        %319 = vperm.xlu0 %318, %v308
        %v320 = vpop.permute.xlu0 %319
        %v321 = vperm.slane %v158, 4
        %v322 = vlaneseq
        %v323 = vshrl.u32 %v322, 7
        %325 = vset.pattern.permute.xlu0 %v323
        %326 = vperm.xlu0 %325, %v321
        %v327 = vpop.permute.xlu0 %326
        %v328 = vlaneseq
        %v329 = vshrl.u32 %v328, 7
        %v330 = vadd.s32 %v329, 8
        %331 = vset.pattern.permute.xlu0 %v330
        %332 = vperm.xlu0 %331, %v321
        %v333 = vpop.permute.xlu0 %332
        %v334 = vperm.slane %v158, 5
        %v335 = vlaneseq
        %v336 = vshrl.u32 %v335, 7
        %338 = vset.pattern.permute.xlu0 %v336
        %339 = vperm.xlu0 %338, %v334
        %v340 = vpop.permute.xlu0 %339
        %v341 = vlaneseq
        %v342 = vshrl.u32 %v341, 7
        %v343 = vadd.s32 %v342, 8
        %344 = vset.pattern.permute.xlu0 %v343
        %345 = vperm.xlu0 %344, %v334
        %v346 = vpop.permute.xlu0 %345
        %v347 = vperm.slane %v158, 6
        %v348 = vlaneseq
        %v349 = vshrl.u32 %v348, 7
        %351 = vset.pattern.permute.xlu0 %v349
        %352 = vperm.xlu0 %351, %v347
        %v353 = vpop.permute.xlu0 %352
        %v354 = vlaneseq
        %v355 = vshrl.u32 %v354, 7
        %v356 = vadd.s32 %v355, 8
        %357 = vset.pattern.permute.xlu0 %v356
        %358 = vperm.xlu0 %357, %v347
        %v359 = vpop.permute.xlu0 %358
        %v360 = vperm.slane %v158, 7
        %v361 = vlaneseq
        %v362 = vshrl.u32 %v361, 7
        %364 = vset.pattern.permute.xlu0 %v362
        %365 = vperm.xlu0 %364, %v360
        %v366 = vpop.permute.xlu0 %365
        %v367 = vlaneseq
        %v368 = vshrl.u32 %v367, 7
        %v369 = vadd.s32 %v368, 8
        %370 = vset.pattern.permute.xlu0 %v369
        %371 = vperm.xlu0 %370, %v360
        %v372 = vpop.permute.xlu0 %371
        %v373 = vperm.slane %v159, 0
        %v374 = vlaneseq
        %v375 = vshrl.u32 %v374, 7
        %377 = vset.pattern.permute.xlu0 %v375
        %378 = vperm.xlu0 %377, %v373
        %v379 = vpop.permute.xlu0 %378
        %v380 = vlaneseq
        %v381 = vshrl.u32 %v380, 7
        %v382 = vadd.s32 %v381, 8
        %383 = vset.pattern.permute.xlu0 %v382
        %384 = vperm.xlu0 %383, %v373
        %v385 = vpop.permute.xlu0 %384
        %v386 = vperm.slane %v159, 1
        %v387 = vlaneseq
        %v388 = vshrl.u32 %v387, 7
        %390 = vset.pattern.permute.xlu0 %v388
        %391 = vperm.xlu0 %390, %v386
        %v392 = vpop.permute.xlu0 %391
        %v393 = vlaneseq
        %v394 = vshrl.u32 %v393, 7
        %v395 = vadd.s32 %v394, 8
        %396 = vset.pattern.permute.xlu0 %v395
        %397 = vperm.xlu0 %396, %v386
        %v398 = vpop.permute.xlu0 %397
        %v399 = vperm.slane %v159, 2
        %v400 = vlaneseq
        %v401 = vshrl.u32 %v400, 7
        %403 = vset.pattern.permute.xlu0 %v401
        %404 = vperm.xlu0 %403, %v399
        %v405 = vpop.permute.xlu0 %404
        %v406 = vlaneseq
        %v407 = vshrl.u32 %v406, 7
        %v408 = vadd.s32 %v407, 8
        %409 = vset.pattern.permute.xlu0 %v408
        %410 = vperm.xlu0 %409, %v399
        %v411 = vpop.permute.xlu0 %410
        %v412 = vperm.slane %v159, 3
        %v413 = vlaneseq
        %v414 = vshrl.u32 %v413, 7
        %416 = vset.pattern.permute.xlu0 %v414
        %417 = vperm.xlu0 %416, %v412
        %v418 = vpop.permute.xlu0 %417
        %v419 = vlaneseq
        %v420 = vshrl.u32 %v419, 7
        %v421 = vadd.s32 %v420, 8
        %422 = vset.pattern.permute.xlu0 %v421
        %423 = vperm.xlu0 %422, %v412
        %v424 = vpop.permute.xlu0 %423
        %v425 = vperm.slane %v159, 4
        %v426 = vlaneseq
        %v427 = vshrl.u32 %v426, 7
        %429 = vset.pattern.permute.xlu0 %v427
        %430 = vperm.xlu0 %429, %v425
        %v431 = vpop.permute.xlu0 %430
        %v432 = vlaneseq
        %v433 = vshrl.u32 %v432, 7
        %v434 = vadd.s32 %v433, 8
        %435 = vset.pattern.permute.xlu0 %v434
        %436 = vperm.xlu0 %435, %v425
        %v437 = vpop.permute.xlu0 %436
        %v438 = vperm.slane %v159, 5
        %v439 = vlaneseq
        %v440 = vshrl.u32 %v439, 7
        %442 = vset.pattern.permute.xlu0 %v440
        %443 = vperm.xlu0 %442, %v438
        %v444 = vpop.permute.xlu0 %443
        %v445 = vlaneseq
        %v446 = vshrl.u32 %v445, 7
        %v447 = vadd.s32 %v446, 8
        %448 = vset.pattern.permute.xlu0 %v447
        %449 = vperm.xlu0 %448, %v438
        %v450 = vpop.permute.xlu0 %449
        %v451 = vperm.slane %v159, 6
        %v452 = vlaneseq
        %v453 = vshrl.u32 %v452, 7
        %455 = vset.pattern.permute.xlu0 %v453
        %456 = vperm.xlu0 %455, %v451
        %v457 = vpop.permute.xlu0 %456
        %v458 = vlaneseq
        %v459 = vshrl.u32 %v458, 7
        %v460 = vadd.s32 %v459, 8
        %461 = vset.pattern.permute.xlu0 %v460
        %462 = vperm.xlu0 %461, %v451
        %v463 = vpop.permute.xlu0 %462
        %v464 = vperm.slane %v159, 7
        %v465 = vlaneseq
        %v466 = vshrl.u32 %v465, 7
        %468 = vset.pattern.permute.xlu0 %v466
        %469 = vperm.xlu0 %468, %v464
        %v470 = vpop.permute.xlu0 %469
        %v471 = vlaneseq
        %v472 = vshrl.u32 %v471, 7
        %v473 = vadd.s32 %v472, 8
        %474 = vset.pattern.permute.xlu0 %v473
        %475 = vperm.xlu0 %474, %v464
        %v476 = vpop.permute.xlu0 %475
        %v477 = vperm.slane %v160, 0
        %v478 = vlaneseq
        %v479 = vshrl.u32 %v478, 7
        %481 = vset.pattern.permute.xlu0 %v479
        %482 = vperm.xlu0 %481, %v477
        %v483 = vpop.permute.xlu0 %482
        %v484 = vlaneseq
        %v485 = vshrl.u32 %v484, 7
        %v486 = vadd.s32 %v485, 8
        %487 = vset.pattern.permute.xlu0 %v486
        %488 = vperm.xlu0 %487, %v477
        %v489 = vpop.permute.xlu0 %488
        %v490 = vperm.slane %v160, 1
        %v491 = vlaneseq
        %v492 = vshrl.u32 %v491, 7
        %494 = vset.pattern.permute.xlu0 %v492
        %495 = vperm.xlu0 %494, %v490
        %v496 = vpop.permute.xlu0 %495
        %v497 = vlaneseq
        %v498 = vshrl.u32 %v497, 7
        %v499 = vadd.s32 %v498, 8
        %500 = vset.pattern.permute.xlu0 %v499
        %501 = vperm.xlu0 %500, %v490
        %v502 = vpop.permute.xlu0 %501
        %v503 = vperm.slane %v160, 2
        %v504 = vlaneseq
        %v505 = vshrl.u32 %v504, 7
        %507 = vset.pattern.permute.xlu0 %v505
        %508 = vperm.xlu0 %507, %v503
        %v509 = vpop.permute.xlu0 %508
        %v510 = vlaneseq
        %v511 = vshrl.u32 %v510, 7
        %v512 = vadd.s32 %v511, 8
        %513 = vset.pattern.permute.xlu0 %v512
        %514 = vperm.xlu0 %513, %v503
        %v515 = vpop.permute.xlu0 %514
        %v516 = vperm.slane %v160, 3
        %v517 = vlaneseq
        %v518 = vshrl.u32 %v517, 7
        %520 = vset.pattern.permute.xlu0 %v518
        %521 = vperm.xlu0 %520, %v516
        %v522 = vpop.permute.xlu0 %521
        %v523 = vlaneseq
        %v524 = vshrl.u32 %v523, 7
        %v525 = vadd.s32 %v524, 8
        %526 = vset.pattern.permute.xlu0 %v525
        %527 = vperm.xlu0 %526, %v516
        %v528 = vpop.permute.xlu0 %527
        %v529 = vperm.slane %v160, 4
        %v530 = vlaneseq
        %v531 = vshrl.u32 %v530, 7
        %533 = vset.pattern.permute.xlu0 %v531
        %534 = vperm.xlu0 %533, %v529
        %v535 = vpop.permute.xlu0 %534
        %v536 = vlaneseq
        %v537 = vshrl.u32 %v536, 7
        %v538 = vadd.s32 %v537, 8
        %539 = vset.pattern.permute.xlu0 %v538
        %540 = vperm.xlu0 %539, %v529
        %v541 = vpop.permute.xlu0 %540
        %v542 = vperm.slane %v160, 5
        %v543 = vlaneseq
        %v544 = vshrl.u32 %v543, 7
        %546 = vset.pattern.permute.xlu0 %v544
        %547 = vperm.xlu0 %546, %v542
        %v548 = vpop.permute.xlu0 %547
        %v549 = vlaneseq
        %v550 = vshrl.u32 %v549, 7
        %v551 = vadd.s32 %v550, 8
        %552 = vset.pattern.permute.xlu0 %v551
        %553 = vperm.xlu0 %552, %v542
        %v554 = vpop.permute.xlu0 %553
        %v555 = vperm.slane %v160, 6
        %v556 = vlaneseq
        %v557 = vshrl.u32 %v556, 7
        %559 = vset.pattern.permute.xlu0 %v557
        %560 = vperm.xlu0 %559, %v555
        %v561 = vpop.permute.xlu0 %560
        %v562 = vlaneseq
        %v563 = vshrl.u32 %v562, 7
        %v564 = vadd.s32 %v563, 8
        %565 = vset.pattern.permute.xlu0 %v564
        %566 = vperm.xlu0 %565, %v555
        %v567 = vpop.permute.xlu0 %566
        %v568 = vperm.slane %v160, 7
        %v569 = vlaneseq
        %v570 = vshrl.u32 %v569, 7
        %572 = vset.pattern.permute.xlu0 %v570
        %573 = vperm.xlu0 %572, %v568
        %v574 = vpop.permute.xlu0 %573
        %v575 = vlaneseq
        %v576 = vshrl.u32 %v575, 7
        %v577 = vadd.s32 %v576, 8
        %578 = vset.pattern.permute.xlu0 %v577
        %579 = vperm.xlu0 %578, %v568
        %v580 = vpop.permute.xlu0 %579
        %vm581 = vcmask 7168
        %v582 = vsel %vm581, %v171, %v379
        %v583 = vsel %vm581, %v177, %v385
        %v584 = vsel %vm581, %v184, %v392
        %v585 = vsel %vm581, %v190, %v398
        %v586 = vsel %vm581, %v197, %v405
        %v587 = vsel %vm581, %v203, %v411
        %v588 = vsel %vm581, %v210, %v418
        %v589 = vsel %vm581, %v216, %v424
        %v590 = vsel %vm581, %v223, %v431
        %v591 = vsel %vm581, %v229, %v437
        %v592 = vsel %vm581, %v236, %v444
        %v593 = vsel %vm581, %v242, %v450
        %v594 = vsel %vm581, %v249, %v457
        %v595 = vsel %vm581, %v255, %v463
        %v596 = vsel %vm581, %v262, %v470
        %v597 = vsel %vm581, %v268, %v476
        %v598 = vsel %vm581, %v275, %v483
        %v599 = vsel %vm581, %v281, %v489
        %v600 = vsel %vm581, %v288, %v496
        %v601 = vsel %vm581, %v294, %v502
        %v602 = vsel %vm581, %v301, %v509
        %v603 = vsel %vm581, %v307, %v515
        %v604 = vsel %vm581, %v314, %v522
        %v605 = vsel %vm581, %v320, %v528
        %v606 = vsel %vm581, %v327, %v535
        %v607 = vsel %vm581, %v333, %v541
        %v608 = vsel %vm581, %v340, %v548
        %v609 = vsel %vm581, %v346, %v554
        %v610 = vsel %vm581, %v353, %v561
        %v611 = vsel %vm581, %v359, %v567
        %v612 = vsel %vm581, %v366, %v574
        %v613 = vsel %vm581, %v372, %v580
        %v614 = vrot.slane %v586, 4
        %vm615 = vcmask 1047556
        %v616 = vsel %vm615, %v614, %v582
        %v617 = vrot.slane %v582, 4
        %v618 = vsel %vm615, %v586, %v617
        %v620 = vunpack.c.l.s4 1983009808
        %v621 = vunpack.c.0.s8 %v620
        %v622 = vperm.slane %v616, %v621
        %v624 = vunpack.c.l.s4 1983009808
        %v625 = vunpack.c.0.s8 %v624
        %v626 = vperm.slane %v618, %v625
        %v627 = vrot.slane %v588, 4
        %v628 = vsel %vm615, %v627, %v584
        %v629 = vrot.slane %v584, 4
        %v630 = vsel %vm615, %v588, %v629
        %v632 = vunpack.c.l.s4 1983009808
        %v633 = vunpack.c.0.s8 %v632
        %v634 = vperm.slane %v628, %v633
        %v636 = vunpack.c.l.s4 1983009808
        %v637 = vunpack.c.0.s8 %v636
        %v638 = vperm.slane %v630, %v637
        %v639 = vrot.slane %v594, 4
        %v640 = vsel %vm615, %v639, %v590
        %v641 = vrot.slane %v590, 4
        %v642 = vsel %vm615, %v594, %v641
        %v644 = vunpack.c.l.s4 1983009808
        %v645 = vunpack.c.0.s8 %v644
        %v646 = vperm.slane %v640, %v645
        %v648 = vunpack.c.l.s4 1983009808
        %v649 = vunpack.c.0.s8 %v648
        %v650 = vperm.slane %v642, %v649
        %v651 = vrot.slane %v596, 4
        %v652 = vsel %vm615, %v651, %v592
        %v653 = vrot.slane %v592, 4
        %v654 = vsel %vm615, %v596, %v653
        %v656 = vunpack.c.l.s4 1983009808
        %v657 = vunpack.c.0.s8 %v656
        %v658 = vperm.slane %v652, %v657
        %v660 = vunpack.c.l.s4 1983009808
        %v661 = vunpack.c.0.s8 %v660
        %v662 = vperm.slane %v654, %v661
        %v663 = vrot.slane %v634, 4
        %v664 = vsel %vm615, %v663, %v622
        %v665 = vrot.slane %v622, 4
        %v666 = vsel %vm615, %v634, %v665
        %v668 = vunpack.c.l.s4 1934713408
        %v669 = vunpack.c.0.s8 %v668
        %v670 = vperm.slane %v664, %v669
        %v672 = vunpack.c.l.s4 1934713408
        %v673 = vunpack.c.0.s8 %v672
        %v674 = vperm.slane %v666, %v673
        %v675 = vrot.slane %v638, 4
        %v676 = vsel %vm615, %v675, %v626
        %v677 = vrot.slane %v626, 4
        %v678 = vsel %vm615, %v638, %v677
        %v680 = vunpack.c.l.s4 1934713408
        %v681 = vunpack.c.0.s8 %v680
        %v682 = vperm.slane %v676, %v681
        %v684 = vunpack.c.l.s4 1934713408
        %v685 = vunpack.c.0.s8 %v684
        %v686 = vperm.slane %v678, %v685
        %v687 = vrot.slane %v658, 4
        %v688 = vsel %vm615, %v687, %v646
        %v689 = vrot.slane %v646, 4
        %v690 = vsel %vm615, %v658, %v689
        %v692 = vunpack.c.l.s4 1934713408
        %v693 = vunpack.c.0.s8 %v692
        %v694 = vperm.slane %v688, %v693
        %v696 = vunpack.c.l.s4 1934713408
        %v697 = vunpack.c.0.s8 %v696
        %v698 = vperm.slane %v690, %v697
        %v699 = vrot.slane %v662, 4
        %v700 = vsel %vm615, %v699, %v650
        %v701 = vrot.slane %v650, 4
        %v702 = vsel %vm615, %v662, %v701
        %v704 = vunpack.c.l.s4 1934713408
        %v705 = vunpack.c.0.s8 %v704
        %v706 = vperm.slane %v700, %v705
        %v708 = vunpack.c.l.s4 1934713408
        %v709 = vunpack.c.0.s8 %v708
        %v710 = vperm.slane %v702, %v709
        %v711 = vrot.slane %v694, 4
        %v712 = vsel %vm615, %v711, %v670
        %v713 = vrot.slane %v670, 4
        %v714 = vsel %vm615, %v694, %v713
        %v715 = vrot.slane %v698, 4
        %v716 = vsel %vm615, %v715, %v674
        %v717 = vrot.slane %v674, 4
        %v718 = vsel %vm615, %v698, %v717
        %v719 = vrot.slane %v706, 4
        %v720 = vsel %vm615, %v719, %v682
        %v721 = vrot.slane %v682, 4
        %v722 = vsel %vm615, %v706, %v721
        %v723 = vrot.slane %v710, 4
        %v724 = vsel %vm615, %v723, %v686
        %v725 = vrot.slane %v686, 4
        %v726 = vsel %vm615, %v710, %v725
        %v727 = vrot.slane %v602, 4
        %v728 = vsel %vm615, %v727, %v598
        %v729 = vrot.slane %v598, 4
        %v730 = vsel %vm615, %v602, %v729
        %v732 = vunpack.c.l.s4 1983009808
        %v733 = vunpack.c.0.s8 %v732
        %v734 = vperm.slane %v728, %v733
        %v736 = vunpack.c.l.s4 1983009808
        %v737 = vunpack.c.0.s8 %v736
        %v738 = vperm.slane %v730, %v737
        %v739 = vrot.slane %v604, 4
        %v740 = vsel %vm615, %v739, %v600
        %v741 = vrot.slane %v600, 4
        %v742 = vsel %vm615, %v604, %v741
        %v744 = vunpack.c.l.s4 1983009808
        %v745 = vunpack.c.0.s8 %v744
        %v746 = vperm.slane %v740, %v745
        %v748 = vunpack.c.l.s4 1983009808
        %v749 = vunpack.c.0.s8 %v748
        %v750 = vperm.slane %v742, %v749
        %v751 = vrot.slane %v610, 4
        %v752 = vsel %vm615, %v751, %v606
        %v753 = vrot.slane %v606, 4
        %v754 = vsel %vm615, %v610, %v753
        %v756 = vunpack.c.l.s4 1983009808
        %v757 = vunpack.c.0.s8 %v756
        %v758 = vperm.slane %v752, %v757
        %v760 = vunpack.c.l.s4 1983009808
        %v761 = vunpack.c.0.s8 %v760
        %v762 = vperm.slane %v754, %v761
        %v763 = vrot.slane %v612, 4
        %v764 = vsel %vm615, %v763, %v608
        %v765 = vrot.slane %v608, 4
        %v766 = vsel %vm615, %v612, %v765
        %v768 = vunpack.c.l.s4 1983009808
        %v769 = vunpack.c.0.s8 %v768
        %v770 = vperm.slane %v764, %v769
        %v772 = vunpack.c.l.s4 1983009808
        %v773 = vunpack.c.0.s8 %v772
        %v774 = vperm.slane %v766, %v773
        %v775 = vrot.slane %v746, 4
        %v776 = vsel %vm615, %v775, %v734
        %v777 = vrot.slane %v734, 4
        %v778 = vsel %vm615, %v746, %v777
        %v780 = vunpack.c.l.s4 1934713408
        %v781 = vunpack.c.0.s8 %v780
        %v782 = vperm.slane %v776, %v781
        %v784 = vunpack.c.l.s4 1934713408
        %v785 = vunpack.c.0.s8 %v784
        %v786 = vperm.slane %v778, %v785
        %v787 = vrot.slane %v750, 4
        %v788 = vsel %vm615, %v787, %v738
        %v789 = vrot.slane %v738, 4
        %v790 = vsel %vm615, %v750, %v789
        %v792 = vunpack.c.l.s4 1934713408
        %v793 = vunpack.c.0.s8 %v792
        %v794 = vperm.slane %v788, %v793
        %v796 = vunpack.c.l.s4 1934713408
        %v797 = vunpack.c.0.s8 %v796
        %v798 = vperm.slane %v790, %v797
        %v799 = vrot.slane %v770, 4
        %v800 = vsel %vm615, %v799, %v758
        %v801 = vrot.slane %v758, 4
        %v802 = vsel %vm615, %v770, %v801
        %v804 = vunpack.c.l.s4 1934713408
        %v805 = vunpack.c.0.s8 %v804
        %v806 = vperm.slane %v800, %v805
        %v808 = vunpack.c.l.s4 1934713408
        %v809 = vunpack.c.0.s8 %v808
        %v810 = vperm.slane %v802, %v809
        %v811 = vrot.slane %v774, 4
        %v812 = vsel %vm615, %v811, %v762
        %v813 = vrot.slane %v762, 4
        %v814 = vsel %vm615, %v774, %v813
        %v816 = vunpack.c.l.s4 1934713408
        %v817 = vunpack.c.0.s8 %v816
        %v818 = vperm.slane %v812, %v817
        %v820 = vunpack.c.l.s4 1934713408
        %v821 = vunpack.c.0.s8 %v820
        %v822 = vperm.slane %v814, %v821
        %v823 = vrot.slane %v806, 4
        %v824 = vsel %vm615, %v823, %v782
        %v825 = vrot.slane %v782, 4
        %v826 = vsel %vm615, %v806, %v825
        %v827 = vrot.slane %v810, 4
        %v828 = vsel %vm615, %v827, %v786
        %v829 = vrot.slane %v786, 4
        %v830 = vsel %vm615, %v810, %v829
        %v831 = vrot.slane %v818, 4
        %v832 = vsel %vm615, %v831, %v794
        %v833 = vrot.slane %v794, 4
        %v834 = vsel %vm615, %v818, %v833
        %v835 = vrot.slane %v822, 4
        %v836 = vsel %vm615, %v835, %v798
        %v837 = vrot.slane %v798, 4
        %v838 = vsel %vm615, %v822, %v837
        %v839 = vrot.slane %v587, 4
        %v840 = vsel %vm615, %v839, %v583
        %v841 = vrot.slane %v583, 4
        %v842 = vsel %vm615, %v587, %v841
        %v844 = vunpack.c.l.s4 1983009808
        %v845 = vunpack.c.0.s8 %v844
        %v846 = vperm.slane %v840, %v845
        %v848 = vunpack.c.l.s4 1983009808
        %v849 = vunpack.c.0.s8 %v848
        %v850 = vperm.slane %v842, %v849
        %v851 = vrot.slane %v589, 4
        %v852 = vsel %vm615, %v851, %v585
        %v853 = vrot.slane %v585, 4
        %v854 = vsel %vm615, %v589, %v853
        %v856 = vunpack.c.l.s4 1983009808
        %v857 = vunpack.c.0.s8 %v856
        %v858 = vperm.slane %v852, %v857
        %v860 = vunpack.c.l.s4 1983009808
        %v861 = vunpack.c.0.s8 %v860
        %v862 = vperm.slane %v854, %v861
        %v863 = vrot.slane %v595, 4
        %v864 = vsel %vm615, %v863, %v591
        %v865 = vrot.slane %v591, 4
        %v866 = vsel %vm615, %v595, %v865
        %v868 = vunpack.c.l.s4 1983009808
        %v869 = vunpack.c.0.s8 %v868
        %v870 = vperm.slane %v864, %v869
        %v872 = vunpack.c.l.s4 1983009808
        %v873 = vunpack.c.0.s8 %v872
        %v874 = vperm.slane %v866, %v873
        %v875 = vrot.slane %v597, 4
        %v876 = vsel %vm615, %v875, %v593
        %v877 = vrot.slane %v593, 4
        %v878 = vsel %vm615, %v597, %v877
        %v880 = vunpack.c.l.s4 1983009808
        %v881 = vunpack.c.0.s8 %v880
        %v882 = vperm.slane %v876, %v881
        %v884 = vunpack.c.l.s4 1983009808
        %v885 = vunpack.c.0.s8 %v884
        %v886 = vperm.slane %v878, %v885
        %v887 = vrot.slane %v858, 4
        %v888 = vsel %vm615, %v887, %v846
        %v889 = vrot.slane %v846, 4
        %v890 = vsel %vm615, %v858, %v889
        %v892 = vunpack.c.l.s4 1934713408
        %v893 = vunpack.c.0.s8 %v892
        %v894 = vperm.slane %v888, %v893
        %v896 = vunpack.c.l.s4 1934713408
        %v897 = vunpack.c.0.s8 %v896
        %v898 = vperm.slane %v890, %v897
        %v899 = vrot.slane %v862, 4
        %v900 = vsel %vm615, %v899, %v850
        %v901 = vrot.slane %v850, 4
        %v902 = vsel %vm615, %v862, %v901
        %v904 = vunpack.c.l.s4 1934713408
        %v905 = vunpack.c.0.s8 %v904
        %v906 = vperm.slane %v900, %v905
        %v908 = vunpack.c.l.s4 1934713408
        %v909 = vunpack.c.0.s8 %v908
        %v910 = vperm.slane %v902, %v909
        %v911 = vrot.slane %v882, 4
        %v912 = vsel %vm615, %v911, %v870
        %v913 = vrot.slane %v870, 4
        %v914 = vsel %vm615, %v882, %v913
        %v916 = vunpack.c.l.s4 1934713408
        %v917 = vunpack.c.0.s8 %v916
        %v918 = vperm.slane %v912, %v917
        %v920 = vunpack.c.l.s4 1934713408
        %v921 = vunpack.c.0.s8 %v920
        %v922 = vperm.slane %v914, %v921
        %v923 = vrot.slane %v886, 4
        %v924 = vsel %vm615, %v923, %v874
        %v925 = vrot.slane %v874, 4
        %v926 = vsel %vm615, %v886, %v925
        %v928 = vunpack.c.l.s4 1934713408
        %v929 = vunpack.c.0.s8 %v928
        %v930 = vperm.slane %v924, %v929
        %v932 = vunpack.c.l.s4 1934713408
        %v933 = vunpack.c.0.s8 %v932
        %v934 = vperm.slane %v926, %v933
        %v935 = vrot.slane %v918, 4
        %v936 = vsel %vm615, %v935, %v894
        %v937 = vrot.slane %v894, 4
        %v938 = vsel %vm615, %v918, %v937
        %v939 = vrot.slane %v922, 4
        %v940 = vsel %vm615, %v939, %v898
        %v941 = vrot.slane %v898, 4
        %v942 = vsel %vm615, %v922, %v941
        %v943 = vrot.slane %v930, 4
        %v944 = vsel %vm615, %v943, %v906
        %v945 = vrot.slane %v906, 4
        %v946 = vsel %vm615, %v930, %v945
        %v947 = vrot.slane %v934, 4
        %v948 = vsel %vm615, %v947, %v910
        %v949 = vrot.slane %v910, 4
        %v950 = vsel %vm615, %v934, %v949
        %v951 = vrot.slane %v603, 4
        %v952 = vsel %vm615, %v951, %v599
        %v953 = vrot.slane %v599, 4
        %v954 = vsel %vm615, %v603, %v953
        %v956 = vunpack.c.l.s4 1983009808
        %v957 = vunpack.c.0.s8 %v956
        %v958 = vperm.slane %v952, %v957
        %v960 = vunpack.c.l.s4 1983009808
        %v961 = vunpack.c.0.s8 %v960
        %v962 = vperm.slane %v954, %v961
        %v963 = vrot.slane %v605, 4
        %v964 = vsel %vm615, %v963, %v601
        %v965 = vrot.slane %v601, 4
        %v966 = vsel %vm615, %v605, %v965
        %v968 = vunpack.c.l.s4 1983009808
        %v969 = vunpack.c.0.s8 %v968
        %v970 = vperm.slane %v964, %v969
        %v972 = vunpack.c.l.s4 1983009808
        %v973 = vunpack.c.0.s8 %v972
        %v974 = vperm.slane %v966, %v973
        %v975 = vrot.slane %v611, 4
        %v976 = vsel %vm615, %v975, %v607
        %v977 = vrot.slane %v607, 4
        %v978 = vsel %vm615, %v611, %v977
        %v980 = vunpack.c.l.s4 1983009808
        %v981 = vunpack.c.0.s8 %v980
        %v982 = vperm.slane %v976, %v981
        %v984 = vunpack.c.l.s4 1983009808
        %v985 = vunpack.c.0.s8 %v984
        %v986 = vperm.slane %v978, %v985
        %v987 = vrot.slane %v613, 4
        %v988 = vsel %vm615, %v987, %v609
        %v989 = vrot.slane %v609, 4
        %v990 = vsel %vm615, %v613, %v989
        %v992 = vunpack.c.l.s4 1983009808
        %v993 = vunpack.c.0.s8 %v992
        %v994 = vperm.slane %v988, %v993
        %v996 = vunpack.c.l.s4 1983009808
        %v997 = vunpack.c.0.s8 %v996
        %v998 = vperm.slane %v990, %v997
        %v999 = vrot.slane %v970, 4
        %v1000 = vsel %vm615, %v999, %v958
        %v1001 = vrot.slane %v958, 4
        %v1002 = vsel %vm615, %v970, %v1001
        %v1004 = vunpack.c.l.s4 1934713408
        %v1005 = vunpack.c.0.s8 %v1004
        %v1006 = vperm.slane %v1000, %v1005
        %v1008 = vunpack.c.l.s4 1934713408
        %v1009 = vunpack.c.0.s8 %v1008
        %v1010 = vperm.slane %v1002, %v1009
        %v1011 = vrot.slane %v974, 4
        %v1012 = vsel %vm615, %v1011, %v962
        %v1013 = vrot.slane %v962, 4
        %v1014 = vsel %vm615, %v974, %v1013
        %v1016 = vunpack.c.l.s4 1934713408
        %v1017 = vunpack.c.0.s8 %v1016
        %v1018 = vperm.slane %v1012, %v1017
        %v1020 = vunpack.c.l.s4 1934713408
        %v1021 = vunpack.c.0.s8 %v1020
        %v1022 = vperm.slane %v1014, %v1021
        %v1023 = vrot.slane %v994, 4
        %v1024 = vsel %vm615, %v1023, %v982
        %v1025 = vrot.slane %v982, 4
        %v1026 = vsel %vm615, %v994, %v1025
        %v1028 = vunpack.c.l.s4 1934713408
        %v1029 = vunpack.c.0.s8 %v1028
        %v1030 = vperm.slane %v1024, %v1029
        %v1032 = vunpack.c.l.s4 1934713408
        %v1033 = vunpack.c.0.s8 %v1032
        %v1034 = vperm.slane %v1026, %v1033
        %v1035 = vrot.slane %v998, 4
        %v1036 = vsel %vm615, %v1035, %v986
        %v1037 = vrot.slane %v986, 4
        %v1038 = vsel %vm615, %v998, %v1037
        %v1040 = vunpack.c.l.s4 1934713408
        %v1041 = vunpack.c.0.s8 %v1040
        %v1042 = vperm.slane %v1036, %v1041
        %v1044 = vunpack.c.l.s4 1934713408
        %v1045 = vunpack.c.0.s8 %v1044
        %v1046 = vperm.slane %v1038, %v1045
        %v1047 = vrot.slane %v1030, 4
        %v1048 = vsel %vm615, %v1047, %v1006
        %v1049 = vrot.slane %v1006, 4
        %v1050 = vsel %vm615, %v1030, %v1049
        %v1051 = vrot.slane %v1034, 4
        %v1052 = vsel %vm615, %v1051, %v1010
        %v1053 = vrot.slane %v1010, 4
        %v1054 = vsel %vm615, %v1034, %v1053
        %v1055 = vrot.slane %v1042, 4
        %v1056 = vsel %vm615, %v1055, %v1018
        %v1057 = vrot.slane %v1018, 4
        %v1058 = vsel %vm615, %v1042, %v1057
        %v1059 = vrot.slane %v1046, 4
        %v1060 = vsel %vm615, %v1059, %v1022
        %v1061 = vrot.slane %v1022, 4
        %v1062 = vsel %vm615, %v1046, %v1061
        %1065 = vrot.lane.b32.xlu0 %v714, 2
        %v1066 = vpop.permute.xlu0 %1065
        %1067 = vrot.lane.b32.xlu0 %v826, 2
        %v1068 = vpop.permute.xlu0 %1067
        %1073 = vrot.lane.b32.xlu0 %v716, 4
        %v1074 = vpop.permute.xlu0 %1073
        %1075 = vrot.lane.b32.xlu0 %v828, 4
        %v1076 = vpop.permute.xlu0 %1075
        %1081 = vrot.lane.b32.xlu0 %v718, 6
        %v1082 = vpop.permute.xlu0 %1081
        %1083 = vrot.lane.b32.xlu0 %v830, 6
        %v1084 = vpop.permute.xlu0 %1083
        %1089 = vrot.lane.b32.xlu0 %v720, 8
        %v1090 = vpop.permute.xlu0 %1089
        %1091 = vrot.lane.b32.xlu0 %v832, 8
        %v1092 = vpop.permute.xlu0 %1091
        %1097 = vrot.lane.b32.xlu0 %v722, 10
        %v1098 = vpop.permute.xlu0 %1097
        %1099 = vrot.lane.b32.xlu0 %v834, 10
        %v1100 = vpop.permute.xlu0 %1099
        %1105 = vrot.lane.b32.xlu0 %v724, 12
        %v1106 = vpop.permute.xlu0 %1105
        %1107 = vrot.lane.b32.xlu0 %v836, 12
        %v1108 = vpop.permute.xlu0 %1107
        %1113 = vrot.lane.b32.xlu0 %v726, 14
        %v1114 = vpop.permute.xlu0 %1113
        %1115 = vrot.lane.b32.xlu0 %v838, 14
        %v1116 = vpop.permute.xlu0 %1115
        %1121 = vrot.lane.b32.xlu0 %v936, 16
        %v1122 = vpop.permute.xlu0 %1121
        %1123 = vrot.lane.b32.xlu0 %v1048, 16
        %v1124 = vpop.permute.xlu0 %1123
        %1129 = vrot.lane.b32.xlu0 %v938, 18
        %v1130 = vpop.permute.xlu0 %1129
        %1131 = vrot.lane.b32.xlu0 %v1050, 18
        %v1132 = vpop.permute.xlu0 %1131
        %1137 = vrot.lane.b32.xlu0 %v940, 20
        %v1138 = vpop.permute.xlu0 %1137
        %1139 = vrot.lane.b32.xlu0 %v1052, 20
        %v1140 = vpop.permute.xlu0 %1139
        %1145 = vrot.lane.b32.xlu0 %v942, 22
        %v1146 = vpop.permute.xlu0 %1145
        %1147 = vrot.lane.b32.xlu0 %v1054, 22
        %v1148 = vpop.permute.xlu0 %1147
        %1153 = vrot.lane.b32.xlu0 %v944, 24
        %v1154 = vpop.permute.xlu0 %1153
        %1155 = vrot.lane.b32.xlu0 %v1056, 24
        %v1156 = vpop.permute.xlu0 %1155
        %1161 = vrot.lane.b32.xlu0 %v946, 26
        %v1162 = vpop.permute.xlu0 %1161
        %1163 = vrot.lane.b32.xlu0 %v1058, 26
        %v1164 = vpop.permute.xlu0 %1163
        %1169 = vrot.lane.b32.xlu0 %v948, 28
        %v1170 = vpop.permute.xlu0 %1169
        %1171 = vrot.lane.b32.xlu0 %v1060, 28
        %v1172 = vpop.permute.xlu0 %1171
        %1177 = vrot.lane.b32.xlu0 %v950, 30
        %v1178 = vpop.permute.xlu0 %1177
        %1179 = vrot.lane.b32.xlu0 %v1062, 30
        %v1180 = vpop.permute.xlu0 %1179
        %vm1183 = vcmask 15360
        %v1184 = vsel %vm1183, %v712, %v1066
        %v1185 = vsel %vm1183, %v824, %v1068
        %vm1186 = vcmask 31744
        %v1187 = vsel %vm1186, %v1184, %v1074
        %v1188 = vsel %vm1186, %v1185, %v1076
        %vm1189 = vcmask 48128
        %v1190 = vsel %vm1189, %v1187, %v1082
        %v1191 = vsel %vm1189, %v1188, %v1084
        %vm1192 = vcmask 64512
        %v1193 = vsel %vm1192, %v1190, %v1090
        %v1194 = vsel %vm1192, %v1191, %v1092
        %vm1195 = vcmask 80896
        %v1196 = vsel %vm1195, %v1193, %v1098
        %v1197 = vsel %vm1195, %v1194, %v1100
        %vm1198 = vcmask 97280
        %v1199 = vsel %vm1198, %v1196, %v1106
        %v1200 = vsel %vm1198, %v1197, %v1108
        %vm1201 = vcmask 113664
        %v1202 = vsel %vm1201, %v1199, %v1114
        %v1203 = vsel %vm1201, %v1200, %v1116
        %vm1204 = vcmask 130048
        %v1205 = vsel %vm1204, %v1202, %v1122
        %v1206 = vsel %vm1204, %v1203, %v1124
        %vm1207 = vcmask 146432
        %v1208 = vsel %vm1207, %v1205, %v1130
        %v1209 = vsel %vm1207, %v1206, %v1132
        %vm1210 = vcmask 162816
        %v1211 = vsel %vm1210, %v1208, %v1138
        %v1212 = vsel %vm1210, %v1209, %v1140
        %vm1213 = vcmask 179200
        %v1214 = vsel %vm1213, %v1211, %v1146
        %v1215 = vsel %vm1213, %v1212, %v1148
        %vm1216 = vcmask 195584
        %v1217 = vsel %vm1216, %v1214, %v1154
        %v1218 = vsel %vm1216, %v1215, %v1156
        %vm1219 = vcmask 211968
        %v1220 = vsel %vm1219, %v1217, %v1162
        %v1221 = vsel %vm1219, %v1218, %v1164
        %vm1222 = vcmask 228352
        %v1223 = vsel %vm1222, %v1220, %v1170
        %v1224 = vsel %vm1222, %v1221, %v1172
        %vm1225 = vcmask 244736
        %v1226 = vsel %vm1225, %v1223, %v1178
        %v1227 = vsel %vm1225, %v1224, %v1180
        %1228 = vst [vmem:[%s154] ss:$2 sm:$0xff] %v1226
        %s1229 = scalar_lea.vmem %s154, 16 [#allocation5]
        %1230 = vst [vmem:[%s1229] ss:$2 sm:$0xff] %v1227
        %v1231 = vperm.slane %v161, 0
        %v1232 = vlaneseq
        %v1233 = vshrl.u32 %v1232, 7
        %1235 = vset.pattern.permute.xlu0 %v1233
        %1236 = vperm.xlu0 %1235, %v1231
        %v1237 = vpop.permute.xlu0 %1236
        %v1238 = vlaneseq
        %v1239 = vshrl.u32 %v1238, 7
        %v1240 = vadd.s32 %v1239, 8
        %1241 = vset.pattern.permute.xlu0 %v1240
        %1242 = vperm.xlu0 %1241, %v1231
        %v1243 = vpop.permute.xlu0 %1242
        %v1244 = vperm.slane %v161, 1
        %v1245 = vlaneseq
        %v1246 = vshrl.u32 %v1245, 7
        %1248 = vset.pattern.permute.xlu0 %v1246
        %1249 = vperm.xlu0 %1248, %v1244
        %v1250 = vpop.permute.xlu0 %1249
        %v1251 = vlaneseq
        %v1252 = vshrl.u32 %v1251, 7
        %v1253 = vadd.s32 %v1252, 8
        %1254 = vset.pattern.permute.xlu0 %v1253
        %1255 = vperm.xlu0 %1254, %v1244
        %v1256 = vpop.permute.xlu0 %1255
        %v1257 = vperm.slane %v161, 2
        %v1258 = vlaneseq
        %v1259 = vshrl.u32 %v1258, 7
        %1261 = vset.pattern.permute.xlu0 %v1259
        %1262 = vperm.xlu0 %1261, %v1257
        %v1263 = vpop.permute.xlu0 %1262
        %v1264 = vlaneseq
        %v1265 = vshrl.u32 %v1264, 7
        %v1266 = vadd.s32 %v1265, 8
        %1267 = vset.pattern.permute.xlu0 %v1266
        %1268 = vperm.xlu0 %1267, %v1257
        %v1269 = vpop.permute.xlu0 %1268
        %v1270 = vperm.slane %v161, 3
        %v1271 = vlaneseq
        %v1272 = vshrl.u32 %v1271, 7
        %1274 = vset.pattern.permute.xlu0 %v1272
        %1275 = vperm.xlu0 %1274, %v1270
        %v1276 = vpop.permute.xlu0 %1275
        %v1277 = vlaneseq
        %v1278 = vshrl.u32 %v1277, 7
        %v1279 = vadd.s32 %v1278, 8
        %1280 = vset.pattern.permute.xlu0 %v1279
        %1281 = vperm.xlu0 %1280, %v1270
        %v1282 = vpop.permute.xlu0 %1281
        %v1283 = vperm.slane %v161, 4
        %v1284 = vlaneseq
        %v1285 = vshrl.u32 %v1284, 7
        %1287 = vset.pattern.permute.xlu0 %v1285
        %1288 = vperm.xlu0 %1287, %v1283
        %v1289 = vpop.permute.xlu0 %1288
        %v1290 = vlaneseq
        %v1291 = vshrl.u32 %v1290, 7
        %v1292 = vadd.s32 %v1291, 8
        %1293 = vset.pattern.permute.xlu0 %v1292
        %1294 = vperm.xlu0 %1293, %v1283
        %v1295 = vpop.permute.xlu0 %1294
        %v1296 = vperm.slane %v161, 5
        %v1297 = vlaneseq
        %v1298 = vshrl.u32 %v1297, 7
        %1300 = vset.pattern.permute.xlu0 %v1298
        %1301 = vperm.xlu0 %1300, %v1296
        %v1302 = vpop.permute.xlu0 %1301
        %v1303 = vlaneseq
        %v1304 = vshrl.u32 %v1303, 7
        %v1305 = vadd.s32 %v1304, 8
        %1306 = vset.pattern.permute.xlu0 %v1305
        %1307 = vperm.xlu0 %1306, %v1296
        %v1308 = vpop.permute.xlu0 %1307
        %v1309 = vperm.slane %v161, 6
        %v1310 = vlaneseq
        %v1311 = vshrl.u32 %v1310, 7
        %1313 = vset.pattern.permute.xlu0 %v1311
        %1314 = vperm.xlu0 %1313, %v1309
        %v1315 = vpop.permute.xlu0 %1314
        %v1316 = vlaneseq
        %v1317 = vshrl.u32 %v1316, 7
        %v1318 = vadd.s32 %v1317, 8
        %1319 = vset.pattern.permute.xlu0 %v1318
        %1320 = vperm.xlu0 %1319, %v1309
        %v1321 = vpop.permute.xlu0 %1320
        %v1322 = vperm.slane %v161, 7
        %v1323 = vlaneseq
        %v1324 = vshrl.u32 %v1323, 7
        %1326 = vset.pattern.permute.xlu0 %v1324
        %1327 = vperm.xlu0 %1326, %v1322
        %v1328 = vpop.permute.xlu0 %1327
        %v1329 = vlaneseq
        %v1330 = vshrl.u32 %v1329, 7
        %v1331 = vadd.s32 %v1330, 8
        %1332 = vset.pattern.permute.xlu0 %v1331
        %1333 = vperm.xlu0 %1332, %v1322
        %v1334 = vpop.permute.xlu0 %1333
        %v1335 = vperm.slane %v162, 0
        %v1336 = vlaneseq
        %v1337 = vshrl.u32 %v1336, 7
        %1339 = vset.pattern.permute.xlu0 %v1337
        %1340 = vperm.xlu0 %1339, %v1335
        %v1341 = vpop.permute.xlu0 %1340
        %v1342 = vlaneseq
        %v1343 = vshrl.u32 %v1342, 7
        %v1344 = vadd.s32 %v1343, 8
        %1345 = vset.pattern.permute.xlu0 %v1344
        %1346 = vperm.xlu0 %1345, %v1335
        %v1347 = vpop.permute.xlu0 %1346
        %v1348 = vperm.slane %v162, 1
        %v1349 = vlaneseq
        %v1350 = vshrl.u32 %v1349, 7
        %1352 = vset.pattern.permute.xlu0 %v1350
        %1353 = vperm.xlu0 %1352, %v1348
        %v1354 = vpop.permute.xlu0 %1353
        %v1355 = vlaneseq
        %v1356 = vshrl.u32 %v1355, 7
        %v1357 = vadd.s32 %v1356, 8
        %1358 = vset.pattern.permute.xlu0 %v1357
        %1359 = vperm.xlu0 %1358, %v1348
        %v1360 = vpop.permute.xlu0 %1359
        %v1361 = vperm.slane %v162, 2
        %v1362 = vlaneseq
        %v1363 = vshrl.u32 %v1362, 7
        %1365 = vset.pattern.permute.xlu0 %v1363
        %1366 = vperm.xlu0 %1365, %v1361
        %v1367 = vpop.permute.xlu0 %1366
        %v1368 = vlaneseq
        %v1369 = vshrl.u32 %v1368, 7
        %v1370 = vadd.s32 %v1369, 8
        %1371 = vset.pattern.permute.xlu0 %v1370
        %1372 = vperm.xlu0 %1371, %v1361
        %v1373 = vpop.permute.xlu0 %1372
        %v1374 = vperm.slane %v162, 3
        %v1375 = vlaneseq
        %v1376 = vshrl.u32 %v1375, 7
        %1378 = vset.pattern.permute.xlu0 %v1376
        %1379 = vperm.xlu0 %1378, %v1374
        %v1380 = vpop.permute.xlu0 %1379
        %v1381 = vlaneseq
        %v1382 = vshrl.u32 %v1381, 7
        %v1383 = vadd.s32 %v1382, 8
        %1384 = vset.pattern.permute.xlu0 %v1383
        %1385 = vperm.xlu0 %1384, %v1374
        %v1386 = vpop.permute.xlu0 %1385
        %v1387 = vperm.slane %v162, 4
        %v1388 = vlaneseq
        %v1389 = vshrl.u32 %v1388, 7
        %1391 = vset.pattern.permute.xlu0 %v1389
        %1392 = vperm.xlu0 %1391, %v1387
        %v1393 = vpop.permute.xlu0 %1392
        %v1394 = vlaneseq
        %v1395 = vshrl.u32 %v1394, 7
        %v1396 = vadd.s32 %v1395, 8
        %1397 = vset.pattern.permute.xlu0 %v1396
        %1398 = vperm.xlu0 %1397, %v1387
        %v1399 = vpop.permute.xlu0 %1398
        %v1400 = vperm.slane %v162, 5
        %v1401 = vlaneseq
        %v1402 = vshrl.u32 %v1401, 7
        %1404 = vset.pattern.permute.xlu0 %v1402
        %1405 = vperm.xlu0 %1404, %v1400
        %v1406 = vpop.permute.xlu0 %1405
        %v1407 = vlaneseq
        %v1408 = vshrl.u32 %v1407, 7
        %v1409 = vadd.s32 %v1408, 8
        %1410 = vset.pattern.permute.xlu0 %v1409
        %1411 = vperm.xlu0 %1410, %v1400
        %v1412 = vpop.permute.xlu0 %1411
        %v1413 = vperm.slane %v162, 6
        %v1414 = vlaneseq
        %v1415 = vshrl.u32 %v1414, 7
        %1417 = vset.pattern.permute.xlu0 %v1415
        %1418 = vperm.xlu0 %1417, %v1413
        %v1419 = vpop.permute.xlu0 %1418
        %v1420 = vlaneseq
        %v1421 = vshrl.u32 %v1420, 7
        %v1422 = vadd.s32 %v1421, 8
        %1423 = vset.pattern.permute.xlu0 %v1422
        %1424 = vperm.xlu0 %1423, %v1413
        %v1425 = vpop.permute.xlu0 %1424
        %v1426 = vperm.slane %v162, 7
        %v1427 = vlaneseq
        %v1428 = vshrl.u32 %v1427, 7
        %1430 = vset.pattern.permute.xlu0 %v1428
        %1431 = vperm.xlu0 %1430, %v1426
        %v1432 = vpop.permute.xlu0 %1431
        %v1433 = vlaneseq
        %v1434 = vshrl.u32 %v1433, 7
        %v1435 = vadd.s32 %v1434, 8
        %1436 = vset.pattern.permute.xlu0 %v1435
        %1437 = vperm.xlu0 %1436, %v1426
        %v1438 = vpop.permute.xlu0 %1437
        %v1439 = vperm.slane %v163, 0
        %v1440 = vlaneseq
        %v1441 = vshrl.u32 %v1440, 7
        %1443 = vset.pattern.permute.xlu0 %v1441
        %1444 = vperm.xlu0 %1443, %v1439
        %v1445 = vpop.permute.xlu0 %1444
        %v1446 = vlaneseq
        %v1447 = vshrl.u32 %v1446, 7
        %v1448 = vadd.s32 %v1447, 8
        %1449 = vset.pattern.permute.xlu0 %v1448
        %1450 = vperm.xlu0 %1449, %v1439
        %v1451 = vpop.permute.xlu0 %1450
        %v1452 = vperm.slane %v163, 1
        %v1453 = vlaneseq
        %v1454 = vshrl.u32 %v1453, 7
        %1456 = vset.pattern.permute.xlu0 %v1454
        %1457 = vperm.xlu0 %1456, %v1452
        %v1458 = vpop.permute.xlu0 %1457
        %v1459 = vlaneseq
        %v1460 = vshrl.u32 %v1459, 7
        %v1461 = vadd.s32 %v1460, 8
        %1462 = vset.pattern.permute.xlu0 %v1461
        %1463 = vperm.xlu0 %1462, %v1452
        %v1464 = vpop.permute.xlu0 %1463
        %v1465 = vperm.slane %v163, 2
        %v1466 = vlaneseq
        %v1467 = vshrl.u32 %v1466, 7
        %1469 = vset.pattern.permute.xlu0 %v1467
        %1470 = vperm.xlu0 %1469, %v1465
        %v1471 = vpop.permute.xlu0 %1470
        %v1472 = vlaneseq
        %v1473 = vshrl.u32 %v1472, 7
        %v1474 = vadd.s32 %v1473, 8
        %1475 = vset.pattern.permute.xlu0 %v1474
        %1476 = vperm.xlu0 %1475, %v1465
        %v1477 = vpop.permute.xlu0 %1476
        %v1478 = vperm.slane %v163, 3
        %v1479 = vlaneseq
        %v1480 = vshrl.u32 %v1479, 7
        %1482 = vset.pattern.permute.xlu0 %v1480
        %1483 = vperm.xlu0 %1482, %v1478
        %v1484 = vpop.permute.xlu0 %1483
        %v1485 = vlaneseq
        %v1486 = vshrl.u32 %v1485, 7
        %v1487 = vadd.s32 %v1486, 8
        %1488 = vset.pattern.permute.xlu0 %v1487
        %1489 = vperm.xlu0 %1488, %v1478
        %v1490 = vpop.permute.xlu0 %1489
        %v1491 = vperm.slane %v163, 4
        %v1492 = vlaneseq
        %v1493 = vshrl.u32 %v1492, 7
        %1495 = vset.pattern.permute.xlu0 %v1493
        %1496 = vperm.xlu0 %1495, %v1491
        %v1497 = vpop.permute.xlu0 %1496
        %v1498 = vlaneseq
        %v1499 = vshrl.u32 %v1498, 7
        %v1500 = vadd.s32 %v1499, 8
        %1501 = vset.pattern.permute.xlu0 %v1500
        %1502 = vperm.xlu0 %1501, %v1491
        %v1503 = vpop.permute.xlu0 %1502
        %v1504 = vperm.slane %v163, 5
        %v1505 = vlaneseq
        %v1506 = vshrl.u32 %v1505, 7
        %1508 = vset.pattern.permute.xlu0 %v1506
        %1509 = vperm.xlu0 %1508, %v1504
        %v1510 = vpop.permute.xlu0 %1509
        %v1511 = vlaneseq
        %v1512 = vshrl.u32 %v1511, 7
        %v1513 = vadd.s32 %v1512, 8
        %1514 = vset.pattern.permute.xlu0 %v1513
        %1515 = vperm.xlu0 %1514, %v1504
        %v1516 = vpop.permute.xlu0 %1515
        %v1517 = vperm.slane %v163, 6
        %v1518 = vlaneseq
        %v1519 = vshrl.u32 %v1518, 7
        %1521 = vset.pattern.permute.xlu0 %v1519
        %1522 = vperm.xlu0 %1521, %v1517
        %v1523 = vpop.permute.xlu0 %1522
        %v1524 = vlaneseq
        %v1525 = vshrl.u32 %v1524, 7
        %v1526 = vadd.s32 %v1525, 8
        %1527 = vset.pattern.permute.xlu0 %v1526
        %1528 = vperm.xlu0 %1527, %v1517
        %v1529 = vpop.permute.xlu0 %1528
        %v1530 = vperm.slane %v163, 7
        %v1531 = vlaneseq
        %v1532 = vshrl.u32 %v1531, 7
        %1534 = vset.pattern.permute.xlu0 %v1532
        %1535 = vperm.xlu0 %1534, %v1530
        %v1536 = vpop.permute.xlu0 %1535
        %v1537 = vlaneseq
        %v1538 = vshrl.u32 %v1537, 7
        %v1539 = vadd.s32 %v1538, 8
        %1540 = vset.pattern.permute.xlu0 %v1539
        %1541 = vperm.xlu0 %1540, %v1530
        %v1542 = vpop.permute.xlu0 %1541
        %v1543 = vperm.slane %v164, 0
        %v1544 = vlaneseq
        %v1545 = vshrl.u32 %v1544, 7
        %1547 = vset.pattern.permute.xlu0 %v1545
        %1548 = vperm.xlu0 %1547, %v1543
        %v1549 = vpop.permute.xlu0 %1548
        %v1550 = vlaneseq
        %v1551 = vshrl.u32 %v1550, 7
        %v1552 = vadd.s32 %v1551, 8
        %1553 = vset.pattern.permute.xlu0 %v1552
        %1554 = vperm.xlu0 %1553, %v1543
        %v1555 = vpop.permute.xlu0 %1554
        %v1556 = vperm.slane %v164, 1
        %v1557 = vlaneseq
        %v1558 = vshrl.u32 %v1557, 7
        %1560 = vset.pattern.permute.xlu0 %v1558
        %1561 = vperm.xlu0 %1560, %v1556
        %v1562 = vpop.permute.xlu0 %1561
        %v1563 = vlaneseq
        %v1564 = vshrl.u32 %v1563, 7
        %v1565 = vadd.s32 %v1564, 8
        %1566 = vset.pattern.permute.xlu0 %v1565
        %1567 = vperm.xlu0 %1566, %v1556
        %v1568 = vpop.permute.xlu0 %1567
        %v1569 = vperm.slane %v164, 2
        %v1570 = vlaneseq
        %v1571 = vshrl.u32 %v1570, 7
        %1573 = vset.pattern.permute.xlu0 %v1571
        %1574 = vperm.xlu0 %1573, %v1569
        %v1575 = vpop.permute.xlu0 %1574
        %v1576 = vlaneseq
        %v1577 = vshrl.u32 %v1576, 7
        %v1578 = vadd.s32 %v1577, 8
        %1579 = vset.pattern.permute.xlu0 %v1578
        %1580 = vperm.xlu0 %1579, %v1569
        %v1581 = vpop.permute.xlu0 %1580
        %v1582 = vperm.slane %v164, 3
        %v1583 = vlaneseq
        %v1584 = vshrl.u32 %v1583, 7
        %1586 = vset.pattern.permute.xlu0 %v1584
        %1587 = vperm.xlu0 %1586, %v1582
        %v1588 = vpop.permute.xlu0 %1587
        %v1589 = vlaneseq
        %v1590 = vshrl.u32 %v1589, 7
        %v1591 = vadd.s32 %v1590, 8
        %1592 = vset.pattern.permute.xlu0 %v1591
        %1593 = vperm.xlu0 %1592, %v1582
        %v1594 = vpop.permute.xlu0 %1593
        %v1595 = vperm.slane %v164, 4
        %v1596 = vlaneseq
        %v1597 = vshrl.u32 %v1596, 7
        %1599 = vset.pattern.permute.xlu0 %v1597
        %1600 = vperm.xlu0 %1599, %v1595
        %v1601 = vpop.permute.xlu0 %1600
        %v1602 = vlaneseq
        %v1603 = vshrl.u32 %v1602, 7
        %v1604 = vadd.s32 %v1603, 8
        %1605 = vset.pattern.permute.xlu0 %v1604
        %1606 = vperm.xlu0 %1605, %v1595
        %v1607 = vpop.permute.xlu0 %1606
        %v1608 = vperm.slane %v164, 5
        %v1609 = vlaneseq
        %v1610 = vshrl.u32 %v1609, 7
        %1612 = vset.pattern.permute.xlu0 %v1610
        %1613 = vperm.xlu0 %1612, %v1608
        %v1614 = vpop.permute.xlu0 %1613
        %v1615 = vlaneseq
        %v1616 = vshrl.u32 %v1615, 7
        %v1617 = vadd.s32 %v1616, 8
        %1618 = vset.pattern.permute.xlu0 %v1617
        %1619 = vperm.xlu0 %1618, %v1608
        %v1620 = vpop.permute.xlu0 %1619
        %v1621 = vperm.slane %v164, 6
        %v1622 = vlaneseq
        %v1623 = vshrl.u32 %v1622, 7
        %1625 = vset.pattern.permute.xlu0 %v1623
        %1626 = vperm.xlu0 %1625, %v1621
        %v1627 = vpop.permute.xlu0 %1626
        %v1628 = vlaneseq
        %v1629 = vshrl.u32 %v1628, 7
        %v1630 = vadd.s32 %v1629, 8
        %1631 = vset.pattern.permute.xlu0 %v1630
        %1632 = vperm.xlu0 %1631, %v1621
        %v1633 = vpop.permute.xlu0 %1632
        %v1634 = vperm.slane %v164, 7
        %v1635 = vlaneseq
        %v1636 = vshrl.u32 %v1635, 7
        %1638 = vset.pattern.permute.xlu0 %v1636
        %1639 = vperm.xlu0 %1638, %v1634
        %v1640 = vpop.permute.xlu0 %1639
        %v1641 = vlaneseq
        %v1642 = vshrl.u32 %v1641, 7
        %v1643 = vadd.s32 %v1642, 8
        %1644 = vset.pattern.permute.xlu0 %v1643
        %1645 = vperm.xlu0 %1644, %v1634
        %v1646 = vpop.permute.xlu0 %1645
        %v1647 = vsel %vm581, %v1237, %v1445
        %v1648 = vsel %vm581, %v1243, %v1451
        %v1649 = vsel %vm581, %v1250, %v1458
        %v1650 = vsel %vm581, %v1256, %v1464
        %v1651 = vsel %vm581, %v1263, %v1471
        %v1652 = vsel %vm581, %v1269, %v1477
        %v1653 = vsel %vm581, %v1276, %v1484
        %v1654 = vsel %vm581, %v1282, %v1490
        %v1655 = vsel %vm581, %v1289, %v1497
        %v1656 = vsel %vm581, %v1295, %v1503
        %v1657 = vsel %vm581, %v1302, %v1510
        %v1658 = vsel %vm581, %v1308, %v1516
        %v1659 = vsel %vm581, %v1315, %v1523
        %v1660 = vsel %vm581, %v1321, %v1529
        %v1661 = vsel %vm581, %v1328, %v1536
        %v1662 = vsel %vm581, %v1334, %v1542
        %v1663 = vsel %vm581, %v1341, %v1549
        %v1664 = vsel %vm581, %v1347, %v1555
        %v1665 = vsel %vm581, %v1354, %v1562
        %v1666 = vsel %vm581, %v1360, %v1568
        %v1667 = vsel %vm581, %v1367, %v1575
        %v1668 = vsel %vm581, %v1373, %v1581
        %v1669 = vsel %vm581, %v1380, %v1588
        %v1670 = vsel %vm581, %v1386, %v1594
        %v1671 = vsel %vm581, %v1393, %v1601
        %v1672 = vsel %vm581, %v1399, %v1607
        %v1673 = vsel %vm581, %v1406, %v1614
        %v1674 = vsel %vm581, %v1412, %v1620
        %v1675 = vsel %vm581, %v1419, %v1627
        %v1676 = vsel %vm581, %v1425, %v1633
        %v1677 = vsel %vm581, %v1432, %v1640
        %v1678 = vsel %vm581, %v1438, %v1646
        %v1679 = vrot.slane %v1651, 4
        %v1680 = vsel %vm615, %v1679, %v1647
        %v1681 = vrot.slane %v1647, 4
        %v1682 = vsel %vm615, %v1651, %v1681
        %v1684 = vunpack.c.l.s4 1983009808
        %v1685 = vunpack.c.0.s8 %v1684
        %v1686 = vperm.slane %v1680, %v1685
        %v1688 = vunpack.c.l.s4 1983009808
        %v1689 = vunpack.c.0.s8 %v1688
        %v1690 = vperm.slane %v1682, %v1689
        %v1691 = vrot.slane %v1653, 4
        %v1692 = vsel %vm615, %v1691, %v1649
        %v1693 = vrot.slane %v1649, 4
        %v1694 = vsel %vm615, %v1653, %v1693
        %v1696 = vunpack.c.l.s4 1983009808
        %v1697 = vunpack.c.0.s8 %v1696
        %v1698 = vperm.slane %v1692, %v1697
        %v1700 = vunpack.c.l.s4 1983009808
        %v1701 = vunpack.c.0.s8 %v1700
        %v1702 = vperm.slane %v1694, %v1701
        %v1703 = vrot.slane %v1659, 4
        %v1704 = vsel %vm615, %v1703, %v1655
        %v1705 = vrot.slane %v1655, 4
        %v1706 = vsel %vm615, %v1659, %v1705
        %v1708 = vunpack.c.l.s4 1983009808
        %v1709 = vunpack.c.0.s8 %v1708
        %v1710 = vperm.slane %v1704, %v1709
        %v1712 = vunpack.c.l.s4 1983009808
        %v1713 = vunpack.c.0.s8 %v1712
        %v1714 = vperm.slane %v1706, %v1713
        %v1715 = vrot.slane %v1661, 4
        %v1716 = vsel %vm615, %v1715, %v1657
        %v1717 = vrot.slane %v1657, 4
        %v1718 = vsel %vm615, %v1661, %v1717
        %v1720 = vunpack.c.l.s4 1983009808
        %v1721 = vunpack.c.0.s8 %v1720
        %v1722 = vperm.slane %v1716, %v1721
        %v1724 = vunpack.c.l.s4 1983009808
        %v1725 = vunpack.c.0.s8 %v1724
        %v1726 = vperm.slane %v1718, %v1725
        %v1727 = vrot.slane %v1698, 4
        %v1728 = vsel %vm615, %v1727, %v1686
        %v1729 = vrot.slane %v1686, 4
        %v1730 = vsel %vm615, %v1698, %v1729
        %v1732 = vunpack.c.l.s4 1934713408
        %v1733 = vunpack.c.0.s8 %v1732
        %v1734 = vperm.slane %v1728, %v1733
        %v1736 = vunpack.c.l.s4 1934713408
        %v1737 = vunpack.c.0.s8 %v1736
        %v1738 = vperm.slane %v1730, %v1737
        %v1739 = vrot.slane %v1702, 4
        %v1740 = vsel %vm615, %v1739, %v1690
        %v1741 = vrot.slane %v1690, 4
        %v1742 = vsel %vm615, %v1702, %v1741
        %v1744 = vunpack.c.l.s4 1934713408
        %v1745 = vunpack.c.0.s8 %v1744
        %v1746 = vperm.slane %v1740, %v1745
        %v1748 = vunpack.c.l.s4 1934713408
        %v1749 = vunpack.c.0.s8 %v1748
        %v1750 = vperm.slane %v1742, %v1749
        %v1751 = vrot.slane %v1722, 4
        %v1752 = vsel %vm615, %v1751, %v1710
        %v1753 = vrot.slane %v1710, 4
        %v1754 = vsel %vm615, %v1722, %v1753
        %v1756 = vunpack.c.l.s4 1934713408
        %v1757 = vunpack.c.0.s8 %v1756
        %v1758 = vperm.slane %v1752, %v1757
        %v1760 = vunpack.c.l.s4 1934713408
        %v1761 = vunpack.c.0.s8 %v1760
        %v1762 = vperm.slane %v1754, %v1761
        %v1763 = vrot.slane %v1726, 4
        %v1764 = vsel %vm615, %v1763, %v1714
        %v1765 = vrot.slane %v1714, 4
        %v1766 = vsel %vm615, %v1726, %v1765
        %v1768 = vunpack.c.l.s4 1934713408
        %v1769 = vunpack.c.0.s8 %v1768
        %v1770 = vperm.slane %v1764, %v1769
        %v1772 = vunpack.c.l.s4 1934713408
        %v1773 = vunpack.c.0.s8 %v1772
        %v1774 = vperm.slane %v1766, %v1773
        %v1775 = vrot.slane %v1758, 4
        %v1776 = vsel %vm615, %v1775, %v1734
        %v1777 = vrot.slane %v1734, 4
        %v1778 = vsel %vm615, %v1758, %v1777
        %v1779 = vrot.slane %v1762, 4
        %v1780 = vsel %vm615, %v1779, %v1738
        %v1781 = vrot.slane %v1738, 4
        %v1782 = vsel %vm615, %v1762, %v1781
        %v1783 = vrot.slane %v1770, 4
        %v1784 = vsel %vm615, %v1783, %v1746
        %v1785 = vrot.slane %v1746, 4
        %v1786 = vsel %vm615, %v1770, %v1785
        %v1787 = vrot.slane %v1774, 4
        %v1788 = vsel %vm615, %v1787, %v1750
        %v1789 = vrot.slane %v1750, 4
        %v1790 = vsel %vm615, %v1774, %v1789
        %v1791 = vrot.slane %v1667, 4
        %v1792 = vsel %vm615, %v1791, %v1663
        %v1793 = vrot.slane %v1663, 4
        %v1794 = vsel %vm615, %v1667, %v1793
        %v1796 = vunpack.c.l.s4 1983009808
        %v1797 = vunpack.c.0.s8 %v1796
        %v1798 = vperm.slane %v1792, %v1797
        %v1800 = vunpack.c.l.s4 1983009808
        %v1801 = vunpack.c.0.s8 %v1800
        %v1802 = vperm.slane %v1794, %v1801
        %v1803 = vrot.slane %v1669, 4
        %v1804 = vsel %vm615, %v1803, %v1665
        %v1805 = vrot.slane %v1665, 4
        %v1806 = vsel %vm615, %v1669, %v1805
        %v1808 = vunpack.c.l.s4 1983009808
        %v1809 = vunpack.c.0.s8 %v1808
        %v1810 = vperm.slane %v1804, %v1809
        %v1812 = vunpack.c.l.s4 1983009808
        %v1813 = vunpack.c.0.s8 %v1812
        %v1814 = vperm.slane %v1806, %v1813
        %v1815 = vrot.slane %v1675, 4
        %v1816 = vsel %vm615, %v1815, %v1671
        %v1817 = vrot.slane %v1671, 4
        %v1818 = vsel %vm615, %v1675, %v1817
        %v1820 = vunpack.c.l.s4 1983009808
        %v1821 = vunpack.c.0.s8 %v1820
        %v1822 = vperm.slane %v1816, %v1821
        %v1824 = vunpack.c.l.s4 1983009808
        %v1825 = vunpack.c.0.s8 %v1824
        %v1826 = vperm.slane %v1818, %v1825
        %v1827 = vrot.slane %v1677, 4
        %v1828 = vsel %vm615, %v1827, %v1673
        %v1829 = vrot.slane %v1673, 4
        %v1830 = vsel %vm615, %v1677, %v1829
        %v1832 = vunpack.c.l.s4 1983009808
        %v1833 = vunpack.c.0.s8 %v1832
        %v1834 = vperm.slane %v1828, %v1833
        %v1836 = vunpack.c.l.s4 1983009808
        %v1837 = vunpack.c.0.s8 %v1836
        %v1838 = vperm.slane %v1830, %v1837
        %v1839 = vrot.slane %v1810, 4
        %v1840 = vsel %vm615, %v1839, %v1798
        %v1841 = vrot.slane %v1798, 4
        %v1842 = vsel %vm615, %v1810, %v1841
        %v1844 = vunpack.c.l.s4 1934713408
        %v1845 = vunpack.c.0.s8 %v1844
        %v1846 = vperm.slane %v1840, %v1845
        %v1848 = vunpack.c.l.s4 1934713408
        %v1849 = vunpack.c.0.s8 %v1848
        %v1850 = vperm.slane %v1842, %v1849
        %v1851 = vrot.slane %v1814, 4
        %v1852 = vsel %vm615, %v1851, %v1802
        %v1853 = vrot.slane %v1802, 4
        %v1854 = vsel %vm615, %v1814, %v1853
        %v1856 = vunpack.c.l.s4 1934713408
        %v1857 = vunpack.c.0.s8 %v1856
        %v1858 = vperm.slane %v1852, %v1857
        %v1860 = vunpack.c.l.s4 1934713408
        %v1861 = vunpack.c.0.s8 %v1860
        %v1862 = vperm.slane %v1854, %v1861
        %v1863 = vrot.slane %v1834, 4
        %v1864 = vsel %vm615, %v1863, %v1822
        %v1865 = vrot.slane %v1822, 4
        %v1866 = vsel %vm615, %v1834, %v1865
        %v1868 = vunpack.c.l.s4 1934713408
        %v1869 = vunpack.c.0.s8 %v1868
        %v1870 = vperm.slane %v1864, %v1869
        %v1872 = vunpack.c.l.s4 1934713408
        %v1873 = vunpack.c.0.s8 %v1872
        %v1874 = vperm.slane %v1866, %v1873
        %v1875 = vrot.slane %v1838, 4
        %v1876 = vsel %vm615, %v1875, %v1826
        %v1877 = vrot.slane %v1826, 4
        %v1878 = vsel %vm615, %v1838, %v1877
        %v1880 = vunpack.c.l.s4 1934713408
        %v1881 = vunpack.c.0.s8 %v1880
        %v1882 = vperm.slane %v1876, %v1881
        %v1884 = vunpack.c.l.s4 1934713408
        %v1885 = vunpack.c.0.s8 %v1884
        %v1886 = vperm.slane %v1878, %v1885
        %v1887 = vrot.slane %v1870, 4
        %v1888 = vsel %vm615, %v1887, %v1846
        %v1889 = vrot.slane %v1846, 4
        %v1890 = vsel %vm615, %v1870, %v1889
        %v1891 = vrot.slane %v1874, 4
        %v1892 = vsel %vm615, %v1891, %v1850
        %v1893 = vrot.slane %v1850, 4
        %v1894 = vsel %vm615, %v1874, %v1893
        %v1895 = vrot.slane %v1882, 4
        %v1896 = vsel %vm615, %v1895, %v1858
        %v1897 = vrot.slane %v1858, 4
        %v1898 = vsel %vm615, %v1882, %v1897
        %v1899 = vrot.slane %v1886, 4
        %v1900 = vsel %vm615, %v1899, %v1862
        %v1901 = vrot.slane %v1862, 4
        %v1902 = vsel %vm615, %v1886, %v1901
        %v1903 = vrot.slane %v1652, 4
        %v1904 = vsel %vm615, %v1903, %v1648
        %v1905 = vrot.slane %v1648, 4
        %v1906 = vsel %vm615, %v1652, %v1905
        %v1908 = vunpack.c.l.s4 1983009808
        %v1909 = vunpack.c.0.s8 %v1908
        %v1910 = vperm.slane %v1904, %v1909
        %v1912 = vunpack.c.l.s4 1983009808
        %v1913 = vunpack.c.0.s8 %v1912
        %v1914 = vperm.slane %v1906, %v1913
        %v1915 = vrot.slane %v1654, 4
        %v1916 = vsel %vm615, %v1915, %v1650
        %v1917 = vrot.slane %v1650, 4
        %v1918 = vsel %vm615, %v1654, %v1917
        %v1920 = vunpack.c.l.s4 1983009808
        %v1921 = vunpack.c.0.s8 %v1920
        %v1922 = vperm.slane %v1916, %v1921
        %v1924 = vunpack.c.l.s4 1983009808
        %v1925 = vunpack.c.0.s8 %v1924
        %v1926 = vperm.slane %v1918, %v1925
        %v1927 = vrot.slane %v1660, 4
        %v1928 = vsel %vm615, %v1927, %v1656
        %v1929 = vrot.slane %v1656, 4
        %v1930 = vsel %vm615, %v1660, %v1929
        %v1932 = vunpack.c.l.s4 1983009808
        %v1933 = vunpack.c.0.s8 %v1932
        %v1934 = vperm.slane %v1928, %v1933
        %v1936 = vunpack.c.l.s4 1983009808
        %v1937 = vunpack.c.0.s8 %v1936
        %v1938 = vperm.slane %v1930, %v1937
        %v1939 = vrot.slane %v1662, 4
        %v1940 = vsel %vm615, %v1939, %v1658
        %v1941 = vrot.slane %v1658, 4
        %v1942 = vsel %vm615, %v1662, %v1941
        %v1944 = vunpack.c.l.s4 1983009808
        %v1945 = vunpack.c.0.s8 %v1944
        %v1946 = vperm.slane %v1940, %v1945
        %v1948 = vunpack.c.l.s4 1983009808
        %v1949 = vunpack.c.0.s8 %v1948
        %v1950 = vperm.slane %v1942, %v1949
        %v1951 = vrot.slane %v1922, 4
        %v1952 = vsel %vm615, %v1951, %v1910
        %v1953 = vrot.slane %v1910, 4
        %v1954 = vsel %vm615, %v1922, %v1953
        %v1956 = vunpack.c.l.s4 1934713408
        %v1957 = vunpack.c.0.s8 %v1956
        %v1958 = vperm.slane %v1952, %v1957
        %v1960 = vunpack.c.l.s4 1934713408
        %v1961 = vunpack.c.0.s8 %v1960
        %v1962 = vperm.slane %v1954, %v1961
        %v1963 = vrot.slane %v1926, 4
        %v1964 = vsel %vm615, %v1963, %v1914
        %v1965 = vrot.slane %v1914, 4
        %v1966 = vsel %vm615, %v1926, %v1965
        %v1968 = vunpack.c.l.s4 1934713408
        %v1969 = vunpack.c.0.s8 %v1968
        %v1970 = vperm.slane %v1964, %v1969
        %v1972 = vunpack.c.l.s4 1934713408
        %v1973 = vunpack.c.0.s8 %v1972
        %v1974 = vperm.slane %v1966, %v1973
        %v1975 = vrot.slane %v1946, 4
        %v1976 = vsel %vm615, %v1975, %v1934
        %v1977 = vrot.slane %v1934, 4
        %v1978 = vsel %vm615, %v1946, %v1977
        %v1980 = vunpack.c.l.s4 1934713408
        %v1981 = vunpack.c.0.s8 %v1980
        %v1982 = vperm.slane %v1976, %v1981
        %v1984 = vunpack.c.l.s4 1934713408
        %v1985 = vunpack.c.0.s8 %v1984
        %v1986 = vperm.slane %v1978, %v1985
        %v1987 = vrot.slane %v1950, 4
        %v1988 = vsel %vm615, %v1987, %v1938
        %v1989 = vrot.slane %v1938, 4
        %v1990 = vsel %vm615, %v1950, %v1989
        %v1992 = vunpack.c.l.s4 1934713408
        %v1993 = vunpack.c.0.s8 %v1992
        %v1994 = vperm.slane %v1988, %v1993
        %v1996 = vunpack.c.l.s4 1934713408
        %v1997 = vunpack.c.0.s8 %v1996
        %v1998 = vperm.slane %v1990, %v1997
        %v1999 = vrot.slane %v1982, 4
        %v2000 = vsel %vm615, %v1999, %v1958
        %v2001 = vrot.slane %v1958, 4
        %v2002 = vsel %vm615, %v1982, %v2001
        %v2003 = vrot.slane %v1986, 4
        %v2004 = vsel %vm615, %v2003, %v1962
        %v2005 = vrot.slane %v1962, 4
        %v2006 = vsel %vm615, %v1986, %v2005
        %v2007 = vrot.slane %v1994, 4
        %v2008 = vsel %vm615, %v2007, %v1970
        %v2009 = vrot.slane %v1970, 4
        %v2010 = vsel %vm615, %v1994, %v2009
        %v2011 = vrot.slane %v1998, 4
        %v2012 = vsel %vm615, %v2011, %v1974
        %v2013 = vrot.slane %v1974, 4
        %v2014 = vsel %vm615, %v1998, %v2013
        %v2015 = vrot.slane %v1668, 4
        %v2016 = vsel %vm615, %v2015, %v1664
        %v2017 = vrot.slane %v1664, 4
        %v2018 = vsel %vm615, %v1668, %v2017
        %v2020 = vunpack.c.l.s4 1983009808
        %v2021 = vunpack.c.0.s8 %v2020
        %v2022 = vperm.slane %v2016, %v2021
        %v2024 = vunpack.c.l.s4 1983009808
        %v2025 = vunpack.c.0.s8 %v2024
        %v2026 = vperm.slane %v2018, %v2025
        %v2027 = vrot.slane %v1670, 4
        %v2028 = vsel %vm615, %v2027, %v1666
        %v2029 = vrot.slane %v1666, 4
        %v2030 = vsel %vm615, %v1670, %v2029
        %v2032 = vunpack.c.l.s4 1983009808
        %v2033 = vunpack.c.0.s8 %v2032
        %v2034 = vperm.slane %v2028, %v2033
        %v2036 = vunpack.c.l.s4 1983009808
        %v2037 = vunpack.c.0.s8 %v2036
        %v2038 = vperm.slane %v2030, %v2037
        %v2039 = vrot.slane %v1676, 4
        %v2040 = vsel %vm615, %v2039, %v1672
        %v2041 = vrot.slane %v1672, 4
        %v2042 = vsel %vm615, %v1676, %v2041
        %v2044 = vunpack.c.l.s4 1983009808
        %v2045 = vunpack.c.0.s8 %v2044
        %v2046 = vperm.slane %v2040, %v2045
        %v2048 = vunpack.c.l.s4 1983009808
        %v2049 = vunpack.c.0.s8 %v2048
        %v2050 = vperm.slane %v2042, %v2049
        %v2051 = vrot.slane %v1678, 4
        %v2052 = vsel %vm615, %v2051, %v1674
        %v2053 = vrot.slane %v1674, 4
        %v2054 = vsel %vm615, %v1678, %v2053
        %v2056 = vunpack.c.l.s4 1983009808
        %v2057 = vunpack.c.0.s8 %v2056
        %v2058 = vperm.slane %v2052, %v2057
        %v2060 = vunpack.c.l.s4 1983009808
        %v2061 = vunpack.c.0.s8 %v2060
        %v2062 = vperm.slane %v2054, %v2061
        %v2063 = vrot.slane %v2034, 4
        %v2064 = vsel %vm615, %v2063, %v2022
        %v2065 = vrot.slane %v2022, 4
        %v2066 = vsel %vm615, %v2034, %v2065
        %v2068 = vunpack.c.l.s4 1934713408
        %v2069 = vunpack.c.0.s8 %v2068
        %v2070 = vperm.slane %v2064, %v2069
        %v2072 = vunpack.c.l.s4 1934713408
        %v2073 = vunpack.c.0.s8 %v2072
        %v2074 = vperm.slane %v2066, %v2073
        %v2075 = vrot.slane %v2038, 4
        %v2076 = vsel %vm615, %v2075, %v2026
        %v2077 = vrot.slane %v2026, 4
        %v2078 = vsel %vm615, %v2038, %v2077
        %v2080 = vunpack.c.l.s4 1934713408
        %v2081 = vunpack.c.0.s8 %v2080
        %v2082 = vperm.slane %v2076, %v2081
        %v2084 = vunpack.c.l.s4 1934713408
        %v2085 = vunpack.c.0.s8 %v2084
        %v2086 = vperm.slane %v2078, %v2085
        %v2087 = vrot.slane %v2058, 4
        %v2088 = vsel %vm615, %v2087, %v2046
        %v2089 = vrot.slane %v2046, 4
        %v2090 = vsel %vm615, %v2058, %v2089
        %v2092 = vunpack.c.l.s4 1934713408
        %v2093 = vunpack.c.0.s8 %v2092
        %v2094 = vperm.slane %v2088, %v2093
        %v2096 = vunpack.c.l.s4 1934713408
        %v2097 = vunpack.c.0.s8 %v2096
        %v2098 = vperm.slane %v2090, %v2097
        %v2099 = vrot.slane %v2062, 4
        %v2100 = vsel %vm615, %v2099, %v2050
        %v2101 = vrot.slane %v2050, 4
        %v2102 = vsel %vm615, %v2062, %v2101
        %v2104 = vunpack.c.l.s4 1934713408
        %v2105 = vunpack.c.0.s8 %v2104
        %v2106 = vperm.slane %v2100, %v2105
        %v2108 = vunpack.c.l.s4 1934713408
        %v2109 = vunpack.c.0.s8 %v2108
        %v2110 = vperm.slane %v2102, %v2109
        %v2111 = vrot.slane %v2094, 4
        %v2112 = vsel %vm615, %v2111, %v2070
        %v2113 = vrot.slane %v2070, 4
        %v2114 = vsel %vm615, %v2094, %v2113
        %v2115 = vrot.slane %v2098, 4
        %v2116 = vsel %vm615, %v2115, %v2074
        %v2117 = vrot.slane %v2074, 4
        %v2118 = vsel %vm615, %v2098, %v2117
        %v2119 = vrot.slane %v2106, 4
        %v2120 = vsel %vm615, %v2119, %v2082
        %v2121 = vrot.slane %v2082, 4
        %v2122 = vsel %vm615, %v2106, %v2121
        %v2123 = vrot.slane %v2110, 4
        %v2124 = vsel %vm615, %v2123, %v2086
        %v2125 = vrot.slane %v2086, 4
        %v2126 = vsel %vm615, %v2110, %v2125
        %2129 = vrot.lane.b32.xlu0 %v1778, 2
        %v2130 = vpop.permute.xlu0 %2129
        %2131 = vrot.lane.b32.xlu0 %v1890, 2
        %v2132 = vpop.permute.xlu0 %2131
        %2137 = vrot.lane.b32.xlu0 %v1780, 4
        %v2138 = vpop.permute.xlu0 %2137
        %2139 = vrot.lane.b32.xlu0 %v1892, 4
        %v2140 = vpop.permute.xlu0 %2139
        %2145 = vrot.lane.b32.xlu0 %v1782, 6
        %v2146 = vpop.permute.xlu0 %2145
        %2147 = vrot.lane.b32.xlu0 %v1894, 6
        %v2148 = vpop.permute.xlu0 %2147
        %2153 = vrot.lane.b32.xlu0 %v1784, 8
        %v2154 = vpop.permute.xlu0 %2153
        %2155 = vrot.lane.b32.xlu0 %v1896, 8
        %v2156 = vpop.permute.xlu0 %2155
        %2161 = vrot.lane.b32.xlu0 %v1786, 10
        %v2162 = vpop.permute.xlu0 %2161
        %2163 = vrot.lane.b32.xlu0 %v1898, 10
        %v2164 = vpop.permute.xlu0 %2163
        %2169 = vrot.lane.b32.xlu0 %v1788, 12
        %v2170 = vpop.permute.xlu0 %2169
        %2171 = vrot.lane.b32.xlu0 %v1900, 12
        %v2172 = vpop.permute.xlu0 %2171
        %2177 = vrot.lane.b32.xlu0 %v1790, 14
        %v2178 = vpop.permute.xlu0 %2177
        %2179 = vrot.lane.b32.xlu0 %v1902, 14
        %v2180 = vpop.permute.xlu0 %2179
        %2185 = vrot.lane.b32.xlu0 %v2000, 16
        %v2186 = vpop.permute.xlu0 %2185
        %2187 = vrot.lane.b32.xlu0 %v2112, 16
        %v2188 = vpop.permute.xlu0 %2187
        %2193 = vrot.lane.b32.xlu0 %v2002, 18
        %v2194 = vpop.permute.xlu0 %2193
        %2195 = vrot.lane.b32.xlu0 %v2114, 18
        %v2196 = vpop.permute.xlu0 %2195
        %2201 = vrot.lane.b32.xlu0 %v2004, 20
        %v2202 = vpop.permute.xlu0 %2201
        %2203 = vrot.lane.b32.xlu0 %v2116, 20
        %v2204 = vpop.permute.xlu0 %2203
        %2209 = vrot.lane.b32.xlu0 %v2006, 22
        %v2210 = vpop.permute.xlu0 %2209
        %2211 = vrot.lane.b32.xlu0 %v2118, 22
        %v2212 = vpop.permute.xlu0 %2211
        %2217 = vrot.lane.b32.xlu0 %v2008, 24
        %v2218 = vpop.permute.xlu0 %2217
        %2219 = vrot.lane.b32.xlu0 %v2120, 24
        %v2220 = vpop.permute.xlu0 %2219
        %2225 = vrot.lane.b32.xlu0 %v2010, 26
        %v2226 = vpop.permute.xlu0 %2225
        %2227 = vrot.lane.b32.xlu0 %v2122, 26
        %v2228 = vpop.permute.xlu0 %2227
        %2233 = vrot.lane.b32.xlu0 %v2012, 28
        %v2234 = vpop.permute.xlu0 %2233
        %2235 = vrot.lane.b32.xlu0 %v2124, 28
        %v2236 = vpop.permute.xlu0 %2235
        %2241 = vrot.lane.b32.xlu0 %v2014, 30
        %v2242 = vpop.permute.xlu0 %2241
        %2243 = vrot.lane.b32.xlu0 %v2126, 30
        %v2244 = vpop.permute.xlu0 %2243
        %v2247 = vsel %vm1183, %v1776, %v2130
        %v2248 = vsel %vm1183, %v1888, %v2132
        %v2249 = vsel %vm1186, %v2247, %v2138
        %v2250 = vsel %vm1186, %v2248, %v2140
        %v2251 = vsel %vm1189, %v2249, %v2146
        %v2252 = vsel %vm1189, %v2250, %v2148
        %v2253 = vsel %vm1192, %v2251, %v2154
        %v2254 = vsel %vm1192, %v2252, %v2156
        %v2255 = vsel %vm1195, %v2253, %v2162
        %v2256 = vsel %vm1195, %v2254, %v2164
        %v2257 = vsel %vm1198, %v2255, %v2170
        %v2258 = vsel %vm1198, %v2256, %v2172
        %v2259 = vsel %vm1201, %v2257, %v2178
        %v2260 = vsel %vm1201, %v2258, %v2180
        %v2261 = vsel %vm1204, %v2259, %v2186
        %v2262 = vsel %vm1204, %v2260, %v2188
        %v2263 = vsel %vm1207, %v2261, %v2194
        %v2264 = vsel %vm1207, %v2262, %v2196
        %v2265 = vsel %vm1210, %v2263, %v2202
        %v2266 = vsel %vm1210, %v2264, %v2204
        %v2267 = vsel %vm1213, %v2265, %v2210
        %v2268 = vsel %vm1213, %v2266, %v2212
        %v2269 = vsel %vm1216, %v2267, %v2218
        %v2270 = vsel %vm1216, %v2268, %v2220
        %v2271 = vsel %vm1219, %v2269, %v2226
        %v2272 = vsel %vm1219, %v2270, %v2228
        %v2273 = vsel %vm1222, %v2271, %v2234
        %v2274 = vsel %vm1222, %v2272, %v2236
        %v2275 = vsel %vm1225, %v2273, %v2242
        %v2276 = vsel %vm1225, %v2274, %v2244
        %s2277 = scalar_lea.vmem %s154, 1 [#allocation5]
        %2278 = vst [vmem:[%s2277] ss:$2 sm:$0xff] %v2275
        %s2279 = scalar_lea.vmem %s154, 17 [#allocation5]
        %2280 = vst [vmem:[%s2279] ss:$2 sm:$0xff] %v2276
        %s2281 = sand.u32 %s68, 1
        %s2282 = scalar_lea.sflag [#allocation4], %s2281
        %s2283 = sand.u32 %s68, 1
        %s2284 = smul.addr %s2283, 32
        %s2285 = scalar_lea.vmem [#allocation5], %s2284
        // Predicated region
        $region29: #{tpu_custom_call.1} parent=23 // pred_check
          %p2286 = pneg %p78
        $region30: #{tpu_custom_call.1} parent=23 // pred_check_branch
          %2288 = sbr.rel (%p2286) target = $region32
        $region31: #{tpu_custom_call.1} parent=23 // pred_region
          %s2289 = smul.u32 4, %s23
          %2291 = vsyncadd %s2282, 0
          %s2292 = smul.addr %s22, 4
          %s2293 = sadd.s32 %s2289, %s2292
          %s2294 = smul.addr %s2293, 8
          %s2295 = scalar_lea.hbm %s1, %s2294
          %s2296 = sshll.u32 %s2285, 4
          %s2297 = int_to_ptr.vmem [resolvable:$true] %s2296
          %s2298 = sshll.u32 %s2295, 4
          %s2299 = int_to_ptr.hbm [resolvable:$true] %s2298
          %2304 = dma.vmem_to_hbm [thread:$0]  %s2297, 512, %s2299, %s2282, 128, 128, 8
        $region32: #{tpu_custom_call.1} parent=23 // pred_fallthru
          _
      $region24: #{tpu_custom_call.1} parent=5 // pred_fallthru
        _
      %p2305 = scmp.le.s32.totalorder 2, %s13
      // Predicated region
      $region33: #{tpu_custom_call.1} parent=5 // pred_check
        %p2306 = pneg %p2305
      $region34: #{tpu_custom_call.1} parent=5 // pred_check_branch
        %2308 = sbr.rel (%p2306) target = $region36
      $region35: #{tpu_custom_call.1} parent=5 // pred_region
        %s2309 = ssub.s32 %s13, 2
        // Predicated region
        $region37: #{tpu_custom_call.1} parent=35 // pred_check
          %p2310 = pneg %p84
        $region38: #{tpu_custom_call.1} parent=35 // pred_check_branch
          %2312 = sbr.rel (%p2310) target = $region40
        $region39: #{tpu_custom_call.1} parent=35 // pred_region
          %s2313 = sand.u32 %s69, 1
          %s2314 = scalar_lea.sflag [#allocation4], %s2313
          %s2315 = sand.u32 %s69, 1
          %s2316 = smul.addr %s2315, 32
          %s2317 = scalar_lea.vmem [#allocation5], %s2316
          %2319 = dma.done %s2314, 512
        $region40: #{tpu_custom_call.1} parent=35 // pred_fallthru
          _
      $region36: #{tpu_custom_call.1} parent=5 // pred_fallthru
        _
    $region6: #{tpu_custom_call.1} parent=1 // loop_footer
      %s17 = sadd.s32 1, %s13
    $region7: #{tpu_custom_call.1} parent=1 // loop_footer_branch
      %12 = sbr.rel target = $region3
    $region8: #{tpu_custom_call.1} parent=1 // loop_exit
      _
    %2320 = vsyncpa [#allocation3], 1
    %s2321 = scalar_lea.sflag [#allocation3], 1
    %2322 = vsyncpa %s2321, 1
    %2323 = vsyncpa [#allocation4], 1
    %s2324 = scalar_lea.sflag [#allocation4], 1
    %2325 = vsyncpa %s2324, 1

</llo_original>
